<compile_context>
chip_gen: v6e
topology: v6e:2x2x1
jax: 0.10.0
libtpu: 0.0.40
codegen_flags: <defaults>
</compile_context>

<pallas_src>
import functools

import jax
import jax.numpy as jnp
from jax.experimental import pallas as pl
from jax.experimental.pallas import tpu as pltpu

CLIPMIN = 1e-5  # scale clamp, matches OmniQuant's CLIPMIN


def _fake_quant_qmax(x, qmax):
    """Per-token (last-dim) dynamic asymmetric uniform-affine fake quantization.

    `qmax` may be a python scalar or a (1, N) per-column vector.  Because the low- and
    high-bit quantizers share the same per-row min/max, a column-wise blend of the two is
    numerically identical to a single pass with a per-column qmax.
    """
    xmin = jnp.min(x, axis=-1, keepdims=True)
    xmax = jnp.max(x, axis=-1, keepdims=True)
    scale = jnp.maximum((xmax - xmin) / qmax, CLIPMIN)
    inv_scale = 1.0 / scale                              # one divide, reused twice
    round_zp = jnp.round(jnp.clip(-xmin * inv_scale, -1e4, 1e4))
    x_int = jnp.clip(jnp.round(x * inv_scale) + round_zp, 0.0, qmax)
    return (x_int - round_zp) * scale


def _spike_quant_matmul_kernel(qmax2_ref, x1_ref, x2_ref, o_ref, x2q_ref, *,
                               use_act_quant, x1_qmax, mm_dtype):
    m = pl.program_id(1)

    # Quantize x2 only once per batch element (first M tile); cache it (already cast to the
    # matmul dtype) in VMEM scratch and reuse it for every remaining M tile.
    @pl.when(m == 0)
    def _quantize_x2_once():
        x2 = x2_ref[...].astype(jnp.float32)             # (K, N)
        if use_act_quant:
            x2 = _fake_quant_qmax(x2, qmax2_ref[...])    # per-column qmax, shape (1, N)
        x2q_ref[...] = x2.astype(x2q_ref.dtype)

    x1 = x1_ref[...].astype(jnp.float32)                 # (TM, K)
    if use_act_quant:
        x1 = _fake_quant_qmax(x1, x1_qmax)

    # Single-pass MXU matmul in mm_dtype (bf16 by default), f32 accumulation.
    o_ref[...] = jnp.dot(x1.astype(mm_dtype), x2q_ref[...],
                         preferred_element_type=jnp.float32).astype(o_ref.dtype)


def spike_quant_matmul(x1, x2, mask_low, *, use_act_quant=True,
                       n_bits_x1=4, n_bits_low=2, n_bits_high=4,
                       matmul_dtype=jnp.bfloat16, tm=256):
    """Pallas implementation of SpikeQuantMatMul.forward((x1, x2)).

    x1: (B, M, K), x2: (B, K, N), mask_low: (N,) bool.  Returns (B, M, N) float32.
    K and N are kept whole per block (the per-token quant statistics reduce over them).
    """
    B, M, K = x1.shape
    B2, K2, N = x2.shape
    assert B == B2 and K == K2
    assert mask_low.shape == (N,), "mask_low_mse has shape (width,) = last dim of x2"

    # M tile: multiple of 8 (sublane) or the full extent.
    tm = min(int(tm), M)
    if tm != M and tm % 8 != 0:
        tm = max(8, (tm // 8) * 8)

    # Fold the boolean low/high select into a per-column qmax vector (host-side).
    qmax_low = float(2 ** n_bits_low - 1)
    qmax_high = float(2 ** n_bits_high - 1)
    x1_qmax = float(2 ** n_bits_x1 - 1)
    qmax2 = jnp.where(mask_low, qmax_low, qmax_high).astype(jnp.float32).reshape(1, N)

    kernel = functools.partial(
        _spike_quant_matmul_kernel,
        use_act_quant=use_act_quant,
        x1_qmax=x1_qmax,
        mm_dtype=matmul_dtype,
    )

    # VMEM budget (tiles double-buffered + quant temporaries + x2 scratch), with margin,
    # capped well below v7x's 64 MiB physical VMEM.
    in1 = x1.dtype.itemsize
    in2 = x2.dtype.itemsize
    mmb = jnp.dtype(matmul_dtype).itemsize
    est = (2 * tm * K * in1          # x1 tiles (double-buffered)
           + 2 * K * N * in2         # x2 block (re-fetched only when b changes)
           + 2 * tm * N * 4          # f32 output tiles
           + K * N * mmb             # quantized-x2 scratch
           + 4 * K * N * 4           # f32 temporaries of the x2 quant pass
           + 4 * tm * K * 4)         # f32 temporaries of the x1 quant pass
    vmem_limit = int(min(max(32 * 2 ** 20, 2 * est), 48 * 2 ** 20))

    cost = pl.CostEstimate(
        flops=int(2 * B * M * K * N),
        transcendentals=0,
        bytes_accessed=int(x1.size * in1 + x2.size * in2 + qmax2.size * 4 + B * M * N * 4),
    )

    return pl.pallas_call(
        kernel,
        out_shape=jax.ShapeDtypeStruct((B, M, N), jnp.float32),
        grid=(B, pl.cdiv(M, tm)),
        in_specs=[
            pl.BlockSpec((1, N), lambda b, m: (0, 0)),          # per-column qmax (broadcast)
            pl.BlockSpec((None, tm, K), lambda b, m: (b, m, 0)),  # x1 tile, batch squeezed
            pl.BlockSpec((None, K, N), lambda b, m: (b, 0, 0)),   # x2 full (K, N) per batch
        ],
        out_specs=pl.BlockSpec((None, tm, N), lambda b, m: (b, m, 0)),
        scratch_shapes=[pltpu.VMEM((K, N), matmul_dtype)],        # cached quantized x2
        compiler_params=pltpu.CompilerParams(
            dimension_semantics=("parallel", "arbitrary"),
            vmem_limit_bytes=vmem_limit),
        cost_estimate=cost,
    )(qmax2, x1, x2)


def _reference(x1, x2, mask_low, *, use_act_quant, n_bits_x1, n_bits_low,
               n_bits_high, matmul_dtype):
    """Pure-JAX reference mirroring the torch module's two-quantizer blend."""
    x1 = x1.astype(jnp.float32)
    x2 = x2.astype(jnp.float32)
    if use_act_quant:
        x1 = _fake_quant_qmax(x1, float(2 ** n_bits_x1 - 1))
        lo = _fake_quant_qmax(x2, float(2 ** n_bits_low - 1))
        hi = _fake_quant_qmax(x2, float(2 ** n_bits_high - 1))
        x2 = jnp.where(mask_low[None, None, :], lo, hi)
    return jnp.einsum("bmk,bkn->bmn",
                      x1.astype(matmul_dtype), x2.astype(matmul_dtype),
                      preferred_element_type=jnp.float32)


if __name__ == "__main__":
    # Small attention-like shapes, lane-dense output (N multiple of 128), bf16 activations.
    B, M, K, N = 2, 128, 256, 128
    low_p = 0.5

    key = jax.random.PRNGKey(0)
    k1, k2 = jax.random.split(key)
    x1 = jax.random.normal(k1, (B, M, K), dtype=jnp.float32).astype(jnp.bfloat16)
    x2 = jax.random.normal(k2, (B, K, N), dtype=jnp.float32).astype(jnp.bfloat16)

    # Deterministic mask_low_mse buffer (shape = (width,)). The module initializes it to all
    # True and calibrates via static(); mark the first int(low_p*width) channels "low" so both
    # quantizer branches are exercised.
    low_quota = int(low_p * N)
    mask_low = jnp.arange(N) < low_quota  # bool (N,)

    # TODO(synk): add_batch()/static() (float64 Hessian-like calibration of mask_low_mse) and
    # the 'multibit_simulate' spike-unrolling inference path are calibration/inference-variant
    # code, not part of this default forward; they are not implemented in the kernel.

    qargs = dict(n_bits_x1=4, n_bits_low=2, n_bits_high=4)

    # 1) Default fast path: bf16 operands on the MXU, f32 accumulation.
    out = spike_quant_matmul(x1, x2, mask_low, use_act_quant=True,
                             matmul_dtype=jnp.bfloat16, **qargs)
    out = jax.block_until_ready(out)
    ref = _reference(x1, x2, mask_low, use_act_quant=True,
                     matmul_dtype=jnp.bfloat16, **qargs)
    assert out.shape == (B, M, N)
    assert jnp.allclose(out, ref, atol=1e-3, rtol=1e-3), "mismatch (bf16 matmul path)"

    # 2) Exact-semantics path: f32 matmul reproduces the torch module's bmm.
    out_f32 = spike_quant_matmul(x1, x2, mask_low, use_act_quant=True,
                                 matmul_dtype=jnp.float32, **qargs)
    out_f32 = jax.block_until_ready(out_f32)
    ref_f32 = _reference(x1, x2, mask_low, use_act_quant=True,
                         matmul_dtype=jnp.float32, **qargs)
    assert jnp.allclose(out_f32, ref_f32, atol=1e-4, rtol=1e-4), "mismatch (f32 matmul path)"

    # 3) use_act_quant=False (module's default quant state): plain bmm.
    out_nq = spike_quant_matmul(x1, x2, mask_low, use_act_quant=False,
                                matmul_dtype=jnp.bfloat16, **qargs)
    out_nq = jax.block_until_ready(out_nq)
    ref_nq = _reference(x1, x2, mask_low, use_act_quant=False,
                        matmul_dtype=jnp.bfloat16, **qargs)
    assert jnp.allclose(out_nq, ref_nq, atol=1e-3, rtol=1e-3), "mismatch (no-quant path)"

    print("KERNEL_OK")
</pallas_src>

<mosaic_0001>
module attributes {stable_mosaic.version = 11 : i64} {
  func.func @_spike_quant_matmul_kernel(%arg0: i32, %arg1: i32, %arg2: memref<1x128xf32, #tpu.memory_space<vmem>>, %arg3: memref<1x128x256xbf16, #tpu.memory_space<vmem>>, %arg4: memref<1x256x128xbf16, #tpu.memory_space<vmem>>, %arg5: memref<1x128x128xf32, #tpu.memory_space<vmem>>, %arg6: memref<256x128xbf16, #tpu.memory_space<vmem>>) attributes {dimension_semantics = [#tpu.dimension_semantics<parallel>, #tpu.dimension_semantics<arbitrary>], iteration_bounds = array<i64: 2, 1>, scalar_prefetch = 0 : i64, scratch_operands = 1 : i64, tpu.core_type = #tpu.core_type<tc>, window_params = [{pipeline_mode = #tpu.pipeline_mode<synchronous>, transform_indices = @transform_0, window_bounds = array<i64: 1, 128>}, {transform_indices = @transform_1, window_bounds = array<i64: 1, 128, 256>}, {transform_indices = @transform_2, window_bounds = array<i64: 1, 256, 128>}, {transform_indices = @transform_3, window_bounds = array<i64: 1, 128, 128>}]} {
    %c0_i32 = arith.constant 0 : i32
    %0 = arith.cmpi eq, %arg1, %c0_i32 : i32
    %1 = arith.extui %0 : i1 to i32
    %c0_i32_0 = arith.constant 0 : i32
    %2 = arith.cmpi ne, %1, %c0_i32_0 : i32
    scf.if %2 {
      %c0_18 = arith.constant 0 : index
      %c0_19 = arith.constant 0 : index
      %c0_20 = arith.constant 0 : index
      %44 = vector.load %arg4[%c0_18, %c0_19, %c0_20] : memref<1x256x128xbf16, #tpu.memory_space<vmem>>, vector<1x256x128xbf16>
      %45 = vector.shape_cast %44 : vector<1x256x128xbf16> to vector<256x128xbf16>
      %46 = arith.extf %45 : vector<256x128xbf16> to vector<256x128xf32>
      %c0_21 = arith.constant 0 : index
      %c0_22 = arith.constant 0 : index
      %47 = vector.load %arg2[%c0_21, %c0_22] : memref<1x128xf32, #tpu.memory_space<vmem>>, vector<1x128xf32>
      %cst_23 = arith.constant dense<0x7F800000> : vector<256xf32>
      %48 = vector.multi_reduction <minimumf>, %46, %cst_23 [1] : vector<256x128xf32> to vector<256xf32>
      %49 = vector.shape_cast %48 : vector<256xf32> to vector<256x1xf32>
      %cst_24 = arith.constant dense<0xFF800000> : vector<256xf32>
      %50 = vector.multi_reduction <maximumf>, %46, %cst_24 [1] : vector<256x128xf32> to vector<256xf32>
      %51 = vector.shape_cast %50 : vector<256xf32> to vector<256x1xf32>
      %52 = arith.subf %51, %49 : vector<256x1xf32>
      %53 = vector.broadcast %52 : vector<256x1xf32> to vector<256x128xf32>
      %54 = vector.broadcast %47 : vector<1x128xf32> to vector<256x128xf32>
      %55 = arith.divf %53, %54 : vector<256x128xf32>
      %cst_25 = arith.constant 9.99999974E-6 : f32
      %56 = vector.broadcast %cst_25 : f32 to vector<256x128xf32>
      %57 = arith.maximumf %55, %56 : vector<256x128xf32>
      %cst_26 = arith.constant 1.000000e+00 : f32
      %58 = vector.broadcast %cst_26 : f32 to vector<256x128xf32>
      %59 = arith.divf %58, %57 : vector<256x128xf32>
      %cst_27 = arith.constant 0.000000e+00 : f32
      %60 = vector.broadcast %cst_27 : f32 to vector<256x1xf32>
      %61 = arith.subf %60, %49 : vector<256x1xf32>
      %62 = vector.broadcast %61 : vector<256x1xf32> to vector<256x128xf32>
      %63 = arith.mulf %62, %59 : vector<256x128xf32>
      %cst_28 = arith.constant -1.000000e+04 : f32
      %cst_29 = arith.constant 1.000000e+04 : f32
      %64 = vector.broadcast %cst_28 : f32 to vector<256x128xf32>
      %65 = arith.maximumf %64, %63 : vector<256x128xf32>
      %66 = vector.broadcast %cst_29 : f32 to vector<256x128xf32>
      %67 = arith.minimumf %66, %65 : vector<256x128xf32>
      %68 = math.roundeven %67 : vector<256x128xf32>
      %69 = arith.mulf %46, %59 : vector<256x128xf32>
      %70 = math.roundeven %69 : vector<256x128xf32>
      %71 = arith.addf %70, %68 : vector<256x128xf32>
      %cst_30 = arith.constant 0.000000e+00 : f32
      %72 = vector.broadcast %cst_30 : f32 to vector<256x128xf32>
      %73 = arith.maximumf %72, %71 : vector<256x128xf32>
      %74 = vector.broadcast %47 : vector<1x128xf32> to vector<256x128xf32>
      %75 = arith.minimumf %74, %73 : vector<256x128xf32>
      %76 = arith.subf %75, %68 : vector<256x128xf32>
      %77 = arith.mulf %76, %57 : vector<256x128xf32>
      %78 = arith.truncf %77 : vector<256x128xf32> to vector<256x128xbf16>
      %c0_31 = arith.constant 0 : index
      %c0_32 = arith.constant 0 : index
      %79 = vector.load %arg6[%c0_31, %c0_32] : memref<256x128xbf16, #tpu.memory_space<vmem>>, vector<256x128xbf16>
      tpu.vector_store %arg6[%c0_31, %c0_32], %78 {strides = array<i32>} : memref<256x128xbf16, #tpu.memory_space<vmem>>, vector<256x128xbf16>,
    } else {
    }
    %c0 = arith.constant 0 : index
    %c0_1 = arith.constant 0 : index
    %c0_2 = arith.constant 0 : index
    %3 = vector.load %arg3[%c0, %c0_1, %c0_2] : memref<1x128x256xbf16, #tpu.memory_space<vmem>>, vector<1x128x256xbf16>
    %4 = vector.shape_cast %3 : vector<1x128x256xbf16> to vector<128x256xbf16>
    %5 = arith.extf %4 : vector<128x256xbf16> to vector<128x256xf32>
    %cst = arith.constant dense<0x7F800000> : vector<128xf32>
    %6 = vector.multi_reduction <minimumf>, %5, %cst [1] : vector<128x256xf32> to vector<128xf32>
    %7 = vector.shape_cast %6 : vector<128xf32> to vector<128x1xf32>
    %cst_3 = arith.constant dense<0xFF800000> : vector<128xf32>
    %8 = vector.multi_reduction <maximumf>, %5, %cst_3 [1] : vector<128x256xf32> to vector<128xf32>
    %9 = vector.shape_cast %8 : vector<128xf32> to vector<128x1xf32>
    %10 = arith.subf %9, %7 : vector<128x1xf32>
    %cst_4 = arith.constant 1.500000e+01 : f32
    %11 = vector.broadcast %cst_4 : f32 to vector<128x1xf32>
    %12 = arith.divf %10, %11 : vector<128x1xf32>
    %cst_5 = arith.constant 9.99999974E-6 : f32
    %13 = vector.broadcast %cst_5 : f32 to vector<128x1xf32>
    %14 = arith.maximumf %12, %13 : vector<128x1xf32>
    %cst_6 = arith.constant 1.000000e+00 : f32
    %15 = vector.broadcast %cst_6 : f32 to vector<128x1xf32>
    %16 = arith.divf %15, %14 : vector<128x1xf32>
    %cst_7 = arith.constant 0.000000e+00 : f32
    %17 = vector.broadcast %cst_7 : f32 to vector<128x1xf32>
    %18 = arith.subf %17, %7 : vector<128x1xf32>
    %19 = arith.mulf %18, %16 : vector<128x1xf32>
    %cst_8 = arith.constant -1.000000e+04 : f32
    %cst_9 = arith.constant 1.000000e+04 : f32
    %20 = vector.broadcast %cst_8 : f32 to vector<128x1xf32>
    %21 = arith.maximumf %20, %19 : vector<128x1xf32>
    %22 = vector.broadcast %cst_9 : f32 to vector<128x1xf32>
    %23 = arith.minimumf %22, %21 : vector<128x1xf32>
    %24 = math.roundeven %23 : vector<128x1xf32>
    %25 = vector.broadcast %16 : vector<128x1xf32> to vector<128x256xf32>
    %26 = arith.mulf %5, %25 : vector<128x256xf32>
    %27 = math.roundeven %26 : vector<128x256xf32>
    %28 = vector.broadcast %24 : vector<128x1xf32> to vector<128x256xf32>
    %29 = arith.addf %27, %28 : vector<128x256xf32>
    %cst_10 = arith.constant 0.000000e+00 : f32
    %cst_11 = arith.constant 1.500000e+01 : f32
    %30 = vector.broadcast %cst_10 : f32 to vector<128x256xf32>
    %31 = arith.maximumf %30, %29 : vector<128x256xf32>
    %32 = vector.broadcast %cst_11 : f32 to vector<128x256xf32>
    %33 = arith.minimumf %32, %31 : vector<128x256xf32>
    %34 = vector.broadcast %24 : vector<128x1xf32> to vector<128x256xf32>
    %35 = arith.subf %33, %34 : vector<128x256xf32>
    %36 = vector.broadcast %14 : vector<128x1xf32> to vector<128x256xf32>
    %37 = arith.mulf %35, %36 : vector<128x256xf32>
    %38 = arith.truncf %37 : vector<128x256xf32> to vector<128x256xbf16>
    %c0_12 = arith.constant 0 : index
    %c0_13 = arith.constant 0 : index
    %39 = vector.load %arg6[%c0_12, %c0_13] : memref<256x128xbf16, #tpu.memory_space<vmem>>, vector<256x128xbf16>
    %cst_14 = arith.constant dense<0.000000e+00> : vector<128x128xf32>
    %40 = tpu.matmul %38, %39, %cst_14 {dimension_numbers = #tpu.dot_dimension_numbers<[1], [0], [0], [1], [0, 0, 1, 1], [], []>} : vector<128x256xbf16>, vector<256x128xbf16>, vector<128x128xf32> -> vector<128x128xf32>
    %c0_15 = arith.constant 0 : index
    %c0_16 = arith.constant 0 : index
    %c0_17 = arith.constant 0 : index
    %41 = vector.load %arg5[%c0_15, %c0_16, %c0_17] : memref<1x128x128xf32, #tpu.memory_space<vmem>>, vector<1x128x128xf32>
    %42 = vector.shape_cast %41 : vector<1x128x128xf32> to vector<128x128xf32>
    %43 = vector.shape_cast %40 : vector<128x128xf32> to vector<1x128x128xf32>
    tpu.vector_store %arg5[%c0_15, %c0_16, %c0_17], %43 {strides = array<i32>} : memref<1x128x128xf32, #tpu.memory_space<vmem>>, vector<1x128x128xf32>,
    return
  }
  func.func @transform_0(%arg0: i32, %arg1: i32) -> (i32, i32) {
    %c0_i32 = arith.constant 0 : i32
    %c0_i32_0 = arith.constant 0 : i32
    %c0_i32_1 = arith.constant 0 : i32
    return %c0_i32, %c0_i32_0 : i32, i32
  }
  func.func @transform_1(%arg0: i32, %arg1: i32) -> (i32, i32, i32) {
    %c0_i32 = arith.constant 0 : i32
    %c0_i32_0 = arith.constant 0 : i32
    return %arg0, %arg1, %c0_i32 : i32, i32, i32
  }
  func.func @transform_2(%arg0: i32, %arg1: i32) -> (i32, i32, i32) {
    %c0_i32 = arith.constant 0 : i32
    %c0_i32_0 = arith.constant 0 : i32
    %c0_i32_1 = arith.constant 0 : i32
    return %arg0, %c0_i32, %c0_i32_0 : i32, i32, i32
  }
  func.func @transform_3(%arg0: i32, %arg1: i32) -> (i32, i32, i32) {
    %c0_i32 = arith.constant 0 : i32
    %c0_i32_0 = arith.constant 0 : i32
    return %arg0, %arg1, %c0_i32 : i32, i32, i32
  }
}

</mosaic_0001>

<llo_original>
// kernel: tpu_custom_call.1
$region0: #{tpu_custom_call.1}
  #allocation0 [shape = 'u32[]', space=smem, size = 0x4, offset = 0x4, fixed_abs, tag = 'smem constant byte address 0x4 - core index']
  #allocation1 [shape = 'u32[144,128]{1,0:T(1,128)}', space=vmem, size = 0x12000, scoped, tag = 'internal scratch']
  #allocation2 [shape = 'bf16[256,128]{1,0:T(8,128)(2,1)}', space=vmem, size = 0x10000, scoped, tag = 'scratch operand']
  %s0 = inlined_call_operand.hbm [shape: f32[1,128], index: 0, kind: input, shape index: {}]
  %s1 = inlined_call_operand.hbm [shape: bf16[2,128,256], index: 1, kind: input, shape index: {}]
  %s2 = inlined_call_operand.hbm [shape: bf16[2,256,128], index: 2, kind: input, shape index: {}]
  %s3 = inlined_call_operand.hbm [shape: f32[2,128,128], index: 3, kind: output, shape index: {}]
  %s4 = sld [smem:[#allocation0]]
  $region61: #{tpu_custom_call.1} parent=0
    _
  %s6 = ssub.s32 1, %s4
  %s7 = scalar_select 0, %s6, %s4
  $region1: #{tpu_custom_call.1} parent=0
    #allocation3 [shape = 'u8[512]{0}', space=vmem, size = 0x400, scoped, tag = 'input window, operand 0, single buffered']
    #allocation4 [shape = 's32[2]{0}', space=sflag, size = 0x8, scoped, tag = 'scoped memory for tpu_custom_call.1']
    #allocation5 [shape = 's32[2]{0}', space=sflag, size = 0x8, scoped, tag = 'scoped memory for tpu_custom_call.1']
    #allocation6 [shape = 'u8[131072]{0}', space=vmem, size = 0x20000, scoped, tag = 'input window, operand 1']
    #allocation7 [shape = 's32[2]{0}', space=sflag, size = 0x8, scoped, tag = 'scoped memory for tpu_custom_call.1']
    #allocation8 [shape = 'u8[131072]{0}', space=vmem, size = 0x20000, scoped, tag = 'input window, operand 2']
    #allocation9 [shape = 'u8[131072]{0}', space=vmem, size = 0x20000, scoped, tag = 'output window, operand 0']
    %8 = vsyncpa [#allocation4], 0
    %9 = vsyncpa [#allocation7], 0
    %s10 = scalar_lea.sflag [#allocation7], 1
    %11 = vsyncpa %s10, 0
    %12 = vsyncpa [#allocation5], 0
    %s13 = scalar_lea.sflag [#allocation5], 1
    %14 = vsyncpa %s13, 0
    loop: start=0, step=1, limit=4
    $region2: #{tpu_custom_call.1} parent=1 // loop_pre_header
      _
    $region3: #{tpu_custom_call.1} parent=1 // loop_header
      %s16 = sphi 0, %s20
      %p17 = scmp.ge.s32.totalorder %s16, 4
      %s23 = sphi 0, %s35
      %s24 = sphi 0, %s31
      %s25 = sphi 0, %s23
      %s26 = sphi 0, %s24
      %s27 = sphi 0, %s25
      %s28 = sphi 0, %s26
      %s36 = sphi 0, %s36
      %s38 = sphi 0, %s36
      %s39 = sphi 0, %s38
      %s53 = sphi 0, %s39
      %s61 = sphi 0, %s63
      %s64 = sphi 0, %s61
      %s65 = sphi 0, %s64
      %s81 = sphi 0, %s65
      %s87 = sphi 0, %s89
      %s90 = sphi 0, %s87
      %s91 = sphi 0, %s90
      %s107 = sphi 0, %s91
      %s115 = sphi 0, %s117
      %s118 = sphi 0, %s115
      %s119 = sphi 0, %s118
      %s135 = sphi 0, %s119
    $region4: #{tpu_custom_call.1} parent=1 // loop_header_branch
      %19 = sbr.rel (%p17) target = $region8
    $region5: #{tpu_custom_call.1} parent=1 // loop_body
      %s21 = ssub.s32 %s16, 1
      %s22 = ssub.s32 %s16, 2
      %s29 = sadd.s32 1, %s24
      %p30 = scmp.ge.s32.totalorder %s29, 1
      %s31 = scalar_select %p30, 0, %s29
      %s32 = sadd.s32 1, %s23
      %s33 = scalar_select %p30, %s32, %s23
      %p34 = scmp.ge.s32.totalorder %s33, 2
      %s35 = scalar_select %p34, 0, %s33
      %s37 = sadd.s32 %s36, 1
      %p40 = scmp.eq.s32.totalorder %s16, 1
      %p41 = scmp.ne.s32.totalorder %s36, %s38
      %p42 = scmp.eq.s32.totalorder %s16, 0
      %p43 = por %p41, %p42
      %p44 = scmp.ne.s32.totalorder %s36, %s38
      %p45 = scmp.eq.s32.totalorder %s21, 1
      %p46 = por %p44, %p45
      %p47 = scmp.ne.s32.totalorder %s38, %s39
      %p48 = scmp.eq.s32.totalorder %s21, 0
      %p49 = por %p47, %p48
      %p50 = scmp.ne.s32.totalorder %s38, %s39
      %p51 = scmp.eq.s32.totalorder %s22, 1
      %p52 = por %p50, %p51
      %p54 = scmp.ne.s32.totalorder %s39, %s53
      %p55 = scmp.eq.s32.totalorder %s22, 0
      %p56 = por %p54, %p55
      %s57 = ssub.s32 %s23, %s35
      %s58 = ssub.s32 %s24, %s31
      %s59 = sor.u32 %s57, %s58
      %p60 = scmp.eq.s32.totalorder %s59, 0
      %s62 = sadd.s32 %s61, 1
      %s63 = scalar_select %p60, %s61, %s62
      %p66 = pneg %p60
      %p67 = scmp.eq.s32.totalorder %s16, 1
      %p68 = por %p66, %p67
      %p69 = scmp.ne.s32.totalorder %s61, %s64
      %p70 = scmp.eq.s32.totalorder %s16, 0
      %p71 = por %p69, %p70
      %p72 = scmp.ne.s32.totalorder %s61, %s64
      %p73 = scmp.eq.s32.totalorder %s21, 1
      %p74 = por %p72, %p73
      %p75 = scmp.ne.s32.totalorder %s64, %s65
      %p76 = scmp.eq.s32.totalorder %s21, 0
      %p77 = por %p75, %p76
      %p78 = scmp.ne.s32.totalorder %s64, %s65
      %p79 = scmp.eq.s32.totalorder %s22, 1
      %p80 = por %p78, %p79
      %p82 = scmp.ne.s32.totalorder %s65, %s81
      %p83 = scmp.eq.s32.totalorder %s22, 0
      %p84 = por %p82, %p83
      %s85 = ssub.s32 %s23, %s35
      %p86 = scmp.eq.s32.totalorder %s85, 0
      %s88 = sadd.s32 %s87, 1
      %s89 = scalar_select %p86, %s87, %s88
      %p92 = pneg %p86
      %p93 = scmp.eq.s32.totalorder %s16, 1
      %p94 = por %p92, %p93
      %p95 = scmp.ne.s32.totalorder %s87, %s90
      %p96 = scmp.eq.s32.totalorder %s16, 0
      %p97 = por %p95, %p96
      %p98 = scmp.ne.s32.totalorder %s87, %s90
      %p99 = scmp.eq.s32.totalorder %s21, 1
      %p100 = por %p98, %p99
      %p101 = scmp.ne.s32.totalorder %s90, %s91
      %p102 = scmp.eq.s32.totalorder %s21, 0
      %p103 = por %p101, %p102
      %p104 = scmp.ne.s32.totalorder %s90, %s91
      %p105 = scmp.eq.s32.totalorder %s22, 1
      %p106 = por %p104, %p105
      %p108 = scmp.ne.s32.totalorder %s91, %s107
      %p109 = scmp.eq.s32.totalorder %s22, 0
      %p110 = por %p108, %p109
      %s111 = ssub.s32 %s23, %s35
      %s112 = ssub.s32 %s24, %s31
      %s113 = sor.u32 %s111, %s112
      %p114 = scmp.eq.s32.totalorder %s113, 0
      %s116 = sadd.s32 %s115, 1
      %s117 = scalar_select %p114, %s115, %s116
      %p120 = pneg %p114
      %p121 = scmp.eq.s32.totalorder %s16, 1
      %p122 = por %p120, %p121
      %p123 = scmp.ne.s32.totalorder %s115, %s118
      %p124 = scmp.eq.s32.totalorder %s16, 0
      %p125 = por %p123, %p124
      %p126 = scmp.ne.s32.totalorder %s115, %s118
      %p127 = scmp.eq.s32.totalorder %s21, 1
      %p128 = por %p126, %p127
      %p129 = scmp.ne.s32.totalorder %s118, %s119
      %p130 = scmp.eq.s32.totalorder %s21, 0
      %p131 = por %p129, %p130
      %p132 = scmp.ne.s32.totalorder %s118, %s119
      %p133 = scmp.eq.s32.totalorder %s22, 1
      %p134 = por %p132, %p133
      %p136 = scmp.ne.s32.totalorder %s119, %s135
      %p137 = scmp.eq.s32.totalorder %s22, 0
      %p138 = por %p136, %p137
      %p139 = scmp.le.s32.totalorder 1, %s16
      %p140 = scmp.lt.s32.totalorder %s16, 3
      %p141 = pnand %p139, %p140
      %p142 = pneg %p141
      // Predicated region
      $region9: #{tpu_custom_call.1} parent=5 // pred_check
        _
      $region10: #{tpu_custom_call.1} parent=5 // pred_check_branch
        %144 = sbr.rel (%p141) target = $region12
      $region11: #{tpu_custom_call.1} parent=5 // pred_region
        %s145 = ssub.s32 %s16, 1
        // Predicated region
        $region13: #{tpu_custom_call.1} parent=11 // pred_check
          %p146 = pneg %p49
        $region14: #{tpu_custom_call.1} parent=11 // pred_check_branch
          %148 = sbr.rel (%p146) target = $region16
        $region15: #{tpu_custom_call.1} parent=11 // pred_region
          %s150 = ssub.s32 16, 16
          %151 = vsyncadd [#allocation4], %s150
          %s153 = sshll.u32 [#allocation3], 4
          %s154 = int_to_ptr.vmem [resolvable:$true] %s153
          %156 = dma.hbm_to_vmem [thread:$0]  %s0, 16, %s154, [#allocation4]
        $region16: #{tpu_custom_call.1} parent=11 // pred_fallthru
          _
      $region12: #{tpu_custom_call.1} parent=5 // pred_fallthru
        _
      %p157 = scmp.lt.s32.totalorder %s16, 2
      // Predicated region
      $region17: #{tpu_custom_call.1} parent=5 // pred_check
        %p158 = pneg %p157
      $region18: #{tpu_custom_call.1} parent=5 // pred_check_branch
        %160 = sbr.rel (%p158) target = $region20
      $region19: #{tpu_custom_call.1} parent=5 // pred_region
        // Predicated region
        $region21: #{tpu_custom_call.1} parent=19 // pred_check
          %p161 = pneg %p71
        $region22: #{tpu_custom_call.1} parent=19 // pred_check_branch
          %163 = sbr.rel (%p161) target = $region24
        $region23: #{tpu_custom_call.1} parent=19 // pred_region
          %s164 = sand.u32 %s16, 1
          %s165 = scalar_lea.sflag [#allocation7], %s164
          %s166 = sand.u32 %s61, 1
          %s167 = smul.addr %s166, 128
          %s168 = scalar_lea.vmem [#allocation6], %s167
          %s169 = smul.u32 16, %s24
          %s171 = ssub.s32 2048, 2048
          %172 = vsyncadd %s165, %s171
          %s173 = smul.addr %s169, 2
          %s174 = smul.addr %s23, 32
          %s175 = sadd.s32 %s173, %s174
          %s176 = smul.addr %s175, 64
          %s177 = scalar_lea.hbm %s1, %s176
          %s178 = sshll.u32 %s168, 4
          %s179 = int_to_ptr.vmem [resolvable:$true] %s178
          %184 = dma.hbm_to_vmem [thread:$0]  %s177, 2048, %s179, %s165, 128, 128, 8
        $region24: #{tpu_custom_call.1} parent=19 // pred_fallthru
          _
        // Predicated region
        $region25: #{tpu_custom_call.1} parent=19 // pred_check
          %p185 = pneg %p97
        $region26: #{tpu_custom_call.1} parent=19 // pred_check_branch
          %187 = sbr.rel (%p185) target = $region28
        $region27: #{tpu_custom_call.1} parent=19 // pred_region
          %s188 = sand.u32 %s16, 1
          %s189 = scalar_lea.sflag [#allocation7], %s188
          %s190 = sand.u32 %s87, 1
          %s191 = smul.addr %s190, 128
          %s192 = scalar_lea.vmem [#allocation8], %s191
          %s194 = ssub.s32 2048, 2048
          %195 = vsyncadd %s189, %s194
          %s196 = smul.addr %s23, 32
          %s197 = smul.addr %s196, 64
          %s198 = scalar_lea.hbm %s2, %s197
          %s199 = sshll.u32 %s192, 4
          %s200 = int_to_ptr.vmem [resolvable:$true] %s199
          %205 = dma.hbm_to_vmem [thread:$0]  %s198, 2048, %s200, %s189, 64, 64, 4
        $region28: #{tpu_custom_call.1} parent=19 // pred_fallthru
          _
      $region20: #{tpu_custom_call.1} parent=5 // pred_fallthru
        _
      %p206 = scmp.le.s32.totalorder 1, %s16
      %p207 = scmp.lt.s32.totalorder %s16, 3
      %p208 = pnand %p206, %p207
      %p209 = pneg %p208
      // Predicated region
      $region29: #{tpu_custom_call.1} parent=5 // pred_check
        _
      $region30: #{tpu_custom_call.1} parent=5 // pred_check_branch
        %211 = sbr.rel (%p208) target = $region32
      $region31: #{tpu_custom_call.1} parent=5 // pred_region
        %s212 = ssub.s32 %s16, 1
        // Predicated region
        $region33: #{tpu_custom_call.1} parent=31 // pred_check
          %p213 = pneg %p49
        $region34: #{tpu_custom_call.1} parent=31 // pred_check_branch
          %215 = sbr.rel (%p213) target = $region36
        $region35: #{tpu_custom_call.1} parent=31 // pred_region
          %216 = dma.done [#allocation4], 16
        $region36: #{tpu_custom_call.1} parent=31 // pred_fallthru
          _
        %s217 = sand.u32 %s21, 1
        %s218 = scalar_lea.sflag [#allocation7], %s217
        %s219 = sand.u32 %s64, 1
        %s220 = smul.addr %s219, 128
        %s221 = scalar_lea.vmem [#allocation6], %s220
        // Predicated region
        $region37: #{tpu_custom_call.1} parent=31 // pred_check
          %p222 = pneg %p77
        $region38: #{tpu_custom_call.1} parent=31 // pred_check_branch
          %224 = sbr.rel (%p222) target = $region40
        $region39: #{tpu_custom_call.1} parent=31 // pred_region
          %225 = dma.done %s218, 2048
        $region40: #{tpu_custom_call.1} parent=31 // pred_fallthru
          _
        %s226 = sand.u32 %s21, 1
        %s227 = scalar_lea.sflag [#allocation7], %s226
        %s228 = sand.u32 %s90, 1
        %s229 = smul.addr %s228, 128
        %s230 = scalar_lea.vmem [#allocation8], %s229
        // Predicated region
        $region41: #{tpu_custom_call.1} parent=31 // pred_check
          %p231 = pneg %p103
        $region42: #{tpu_custom_call.1} parent=31 // pred_check_branch
          %233 = sbr.rel (%p231) target = $region44
        $region43: #{tpu_custom_call.1} parent=31 // pred_region
          %234 = dma.done %s227, 2048
        $region44: #{tpu_custom_call.1} parent=31 // pred_fallthru
          _
        %p235 = pneg %p49
        %p236 = pneg %p46
        %s237 = sand.u32 %s21, 1
        %s238 = scalar_lea.sflag [#allocation7], %s237
        %s239 = sand.u32 %s64, 1
        %s240 = smul.addr %s239, 128
        %s241 = scalar_lea.vmem [#allocation6], %s240
        %p242 = pneg %p77
        %p243 = pneg %p74
        %s244 = sand.u32 %s21, 1
        %s245 = scalar_lea.sflag [#allocation7], %s244
        %s246 = sand.u32 %s90, 1
        %s247 = smul.addr %s246, 128
        %s248 = scalar_lea.vmem [#allocation8], %s247
        %p249 = pneg %p103
        %p250 = pneg %p100
        %p251 = pneg %p131
        %p252 = pneg %p128
        %s253 = sand.u32 %s118, 1
        %s254 = scalar_lea.sflag [#allocation5], %s253
        %s255 = sand.u32 %s118, 1
        %s256 = smul.addr %s255, 128
        %s257 = scalar_lea.vmem [#allocation9], %s256
        %s258 = smul.u32 16, %s26
        %s259 = smul.u32 16, %s26
        %p261 = scmp.eq.s32.totalorder %s26, 0
        // Predicated region
        $region45: #{tpu_custom_call.1} parent=31 // pred_check
          %p262 = pneg %p261
        $region46: #{tpu_custom_call.1} parent=31 // pred_check_branch
          %264 = sbr.rel (%p262) target = $region48
        $region47: #{tpu_custom_call.1} parent=31 // pred_region
          %v265 = vld [vmem:[%s230] sm:$0xf]
          %v266 = vld [vmem:[%s230 + $0x4] sm:$0xf]
          %v267 = vld [vmem:[%s230 + $0x8] sm:$0xf]
          %v268 = vld [vmem:[%s230 + $0xc] sm:$0xf]
          %v269 = vld [vmem:[%s230 + $0x10] sm:$0xf]
          %v270 = vld [vmem:[%s230 + $0x14] sm:$0xf]
          %v271 = vld [vmem:[%s230 + $0x18] sm:$0xf]
          %v272 = vld [vmem:[%s230 + $0x1c] sm:$0xf]
          %v273 = vld [vmem:[%s230 + $0x20] sm:$0xf]
          %v274 = vld [vmem:[%s230 + $0x24] sm:$0xf]
          %v275 = vld [vmem:[%s230 + $0x28] sm:$0xf]
          %v276 = vld [vmem:[%s230 + $0x2c] sm:$0xf]
          %v277 = vld [vmem:[%s230 + $0x30] sm:$0xf]
          %v278 = vld [vmem:[%s230 + $0x34] sm:$0xf]
          %v279 = vld [vmem:[%s230 + $0x38] sm:$0xf]
          %v280 = vld [vmem:[%s230 + $0x3c] sm:$0xf]
          %v281 = vld [vmem:[%s230 + $0x40] sm:$0xf]
          %v282 = vld [vmem:[%s230 + $0x44] sm:$0xf]
          %v283 = vld [vmem:[%s230 + $0x48] sm:$0xf]
          %v284 = vld [vmem:[%s230 + $0x4c] sm:$0xf]
          %v285 = vld [vmem:[%s230 + $0x50] sm:$0xf]
          %v286 = vld [vmem:[%s230 + $0x54] sm:$0xf]
          %v287 = vld [vmem:[%s230 + $0x58] sm:$0xf]
          %v288 = vld [vmem:[%s230 + $0x5c] sm:$0xf]
          %v289 = vld [vmem:[%s230 + $0x60] sm:$0xf]
          %v290 = vld [vmem:[%s230 + $0x64] sm:$0xf]
          %v291 = vld [vmem:[%s230 + $0x68] sm:$0xf]
          %v292 = vld [vmem:[%s230 + $0x6c] sm:$0xf]
          %v293 = vld [vmem:[%s230 + $0x70] sm:$0xf]
          %v294 = vld [vmem:[%s230 + $0x74] sm:$0xf]
          %v295 = vld [vmem:[%s230 + $0x78] sm:$0xf]
          %v296 = vld [vmem:[%s230 + $0x7c] sm:$0xf]
          %v297 = vunpack.c.l.bf16 %v265
          %v298 = vunpack.c.l.bf16 %v266
          %v299 = vunpack.c.l.bf16 %v267
          %v300 = vunpack.c.l.bf16 %v268
          %v301 = vunpack.c.l.bf16 %v269
          %v302 = vunpack.c.l.bf16 %v270
          %v303 = vunpack.c.l.bf16 %v271
          %v304 = vunpack.c.l.bf16 %v272
          %v305 = vunpack.c.l.bf16 %v273
          %v306 = vunpack.c.l.bf16 %v274
          %v307 = vunpack.c.l.bf16 %v275
          %v308 = vunpack.c.l.bf16 %v276
          %v309 = vunpack.c.l.bf16 %v277
          %v310 = vunpack.c.l.bf16 %v278
          %v311 = vunpack.c.l.bf16 %v279
          %v312 = vunpack.c.l.bf16 %v280
          %v313 = vunpack.c.l.bf16 %v281
          %v314 = vunpack.c.l.bf16 %v282
          %v315 = vunpack.c.l.bf16 %v283
          %v316 = vunpack.c.l.bf16 %v284
          %v317 = vunpack.c.l.bf16 %v285
          %v318 = vunpack.c.l.bf16 %v286
          %v319 = vunpack.c.l.bf16 %v287
          %v320 = vunpack.c.l.bf16 %v288
          %v321 = vunpack.c.l.bf16 %v289
          %v322 = vunpack.c.l.bf16 %v290
          %v323 = vunpack.c.l.bf16 %v291
          %v324 = vunpack.c.l.bf16 %v292
          %v325 = vunpack.c.l.bf16 %v293
          %v326 = vunpack.c.l.bf16 %v294
          %v327 = vunpack.c.l.bf16 %v295
          %v328 = vunpack.c.l.bf16 %v296
          %v329 = vld [vmem:[#allocation3] sm:$0x1]
          %330 = vmin.xlane.f32.xlu0 %v297
          %v331 = vpop.xlane.xlu0 %330
          %332 = vmin.xlane.f32.xlu0 %v298
          %v333 = vpop.xlane.xlu0 %332
          %334 = vmin.xlane.f32.xlu0 %v299
          %v335 = vpop.xlane.xlu0 %334
          %336 = vmin.xlane.f32.xlu0 %v300
          %v337 = vpop.xlane.xlu0 %336
          %338 = vmin.xlane.f32.xlu0 %v301
          %v339 = vpop.xlane.xlu0 %338
          %340 = vmin.xlane.f32.xlu0 %v302
          %v341 = vpop.xlane.xlu0 %340
          %342 = vmin.xlane.f32.xlu0 %v303
          %v343 = vpop.xlane.xlu0 %342
          %344 = vmin.xlane.f32.xlu0 %v304
          %v345 = vpop.xlane.xlu0 %344
          %346 = vmin.xlane.f32.xlu0 %v305
          %v347 = vpop.xlane.xlu0 %346
          %348 = vmin.xlane.f32.xlu0 %v306
          %v349 = vpop.xlane.xlu0 %348
          %350 = vmin.xlane.f32.xlu0 %v307
          %v351 = vpop.xlane.xlu0 %350
          %352 = vmin.xlane.f32.xlu0 %v308
          %v353 = vpop.xlane.xlu0 %352
          %354 = vmin.xlane.f32.xlu0 %v309
          %v355 = vpop.xlane.xlu0 %354
          %356 = vmin.xlane.f32.xlu0 %v310
          %v357 = vpop.xlane.xlu0 %356
          %358 = vmin.xlane.f32.xlu0 %v311
          %v359 = vpop.xlane.xlu0 %358
          %360 = vmin.xlane.f32.xlu0 %v312
          %v361 = vpop.xlane.xlu0 %360
          %362 = vmin.xlane.f32.xlu0 %v313
          %v363 = vpop.xlane.xlu0 %362
          %364 = vmin.xlane.f32.xlu0 %v314
          %v365 = vpop.xlane.xlu0 %364
          %366 = vmin.xlane.f32.xlu0 %v315
          %v367 = vpop.xlane.xlu0 %366
          %368 = vmin.xlane.f32.xlu0 %v316
          %v369 = vpop.xlane.xlu0 %368
          %370 = vmin.xlane.f32.xlu0 %v317
          %v371 = vpop.xlane.xlu0 %370
          %372 = vmin.xlane.f32.xlu0 %v318
          %v373 = vpop.xlane.xlu0 %372
          %374 = vmin.xlane.f32.xlu0 %v319
          %v375 = vpop.xlane.xlu0 %374
          %376 = vmin.xlane.f32.xlu0 %v320
          %v377 = vpop.xlane.xlu0 %376
          %378 = vmin.xlane.f32.xlu0 %v321
          %v379 = vpop.xlane.xlu0 %378
          %380 = vmin.xlane.f32.xlu0 %v322
          %v381 = vpop.xlane.xlu0 %380
          %382 = vmin.xlane.f32.xlu0 %v323
          %v383 = vpop.xlane.xlu0 %382
          %384 = vmin.xlane.f32.xlu0 %v324
          %v385 = vpop.xlane.xlu0 %384
          %386 = vmin.xlane.f32.xlu0 %v325
          %v387 = vpop.xlane.xlu0 %386
          %388 = vmin.xlane.f32.xlu0 %v326
          %v389 = vpop.xlane.xlu0 %388
          %390 = vmin.xlane.f32.xlu0 %v327
          %v391 = vpop.xlane.xlu0 %390
          %392 = vmin.xlane.f32.xlu0 %v328
          %v393 = vpop.xlane.xlu0 %392
          %394 = vmax.xlane.f32.xlu0 %v297
          %v395 = vpop.xlane.xlu0 %394
          %396 = vmax.xlane.f32.xlu0 %v298
          %v397 = vpop.xlane.xlu0 %396
          %398 = vmax.xlane.f32.xlu0 %v299
          %v399 = vpop.xlane.xlu0 %398
          %400 = vmax.xlane.f32.xlu0 %v300
          %v401 = vpop.xlane.xlu0 %400
          %402 = vmax.xlane.f32.xlu0 %v301
          %v403 = vpop.xlane.xlu0 %402
          %404 = vmax.xlane.f32.xlu0 %v302
          %v405 = vpop.xlane.xlu0 %404
          %406 = vmax.xlane.f32.xlu0 %v303
          %v407 = vpop.xlane.xlu0 %406
          %408 = vmax.xlane.f32.xlu0 %v304
          %v409 = vpop.xlane.xlu0 %408
          %410 = vmax.xlane.f32.xlu0 %v305
          %v411 = vpop.xlane.xlu0 %410
          %412 = vmax.xlane.f32.xlu0 %v306
          %v413 = vpop.xlane.xlu0 %412
          %414 = vmax.xlane.f32.xlu0 %v307
          %v415 = vpop.xlane.xlu0 %414
          %416 = vmax.xlane.f32.xlu0 %v308
          %v417 = vpop.xlane.xlu0 %416
          %418 = vmax.xlane.f32.xlu0 %v309
          %v419 = vpop.xlane.xlu0 %418
          %420 = vmax.xlane.f32.xlu0 %v310
          %v421 = vpop.xlane.xlu0 %420
          %422 = vmax.xlane.f32.xlu0 %v311
          %v423 = vpop.xlane.xlu0 %422
          %424 = vmax.xlane.f32.xlu0 %v312
          %v425 = vpop.xlane.xlu0 %424
          %426 = vmax.xlane.f32.xlu0 %v313
          %v427 = vpop.xlane.xlu0 %426
          %428 = vmax.xlane.f32.xlu0 %v314
          %v429 = vpop.xlane.xlu0 %428
          %430 = vmax.xlane.f32.xlu0 %v315
          %v431 = vpop.xlane.xlu0 %430
          %432 = vmax.xlane.f32.xlu0 %v316
          %v433 = vpop.xlane.xlu0 %432
          %434 = vmax.xlane.f32.xlu0 %v317
          %v435 = vpop.xlane.xlu0 %434
          %436 = vmax.xlane.f32.xlu0 %v318
          %v437 = vpop.xlane.xlu0 %436
          %438 = vmax.xlane.f32.xlu0 %v319
          %v439 = vpop.xlane.xlu0 %438
          %440 = vmax.xlane.f32.xlu0 %v320
          %v441 = vpop.xlane.xlu0 %440
          %442 = vmax.xlane.f32.xlu0 %v321
          %v443 = vpop.xlane.xlu0 %442
          %444 = vmax.xlane.f32.xlu0 %v322
          %v445 = vpop.xlane.xlu0 %444
          %446 = vmax.xlane.f32.xlu0 %v323
          %v447 = vpop.xlane.xlu0 %446
          %448 = vmax.xlane.f32.xlu0 %v324
          %v449 = vpop.xlane.xlu0 %448
          %450 = vmax.xlane.f32.xlu0 %v325
          %v451 = vpop.xlane.xlu0 %450
          %452 = vmax.xlane.f32.xlu0 %v326
          %v453 = vpop.xlane.xlu0 %452
          %454 = vmax.xlane.f32.xlu0 %v327
          %v455 = vpop.xlane.xlu0 %454
          %456 = vmax.xlane.f32.xlu0 %v328
          %v457 = vpop.xlane.xlu0 %456
          %v458 = vsub.f32 %v395, %v331
          %v459 = vsub.f32 %v397, %v333
          %v460 = vsub.f32 %v399, %v335
          %v461 = vsub.f32 %v401, %v337
          %v462 = vsub.f32 %v403, %v339
          %v463 = vsub.f32 %v405, %v341
          %v464 = vsub.f32 %v407, %v343
          %v465 = vsub.f32 %v409, %v345
          %v466 = vsub.f32 %v411, %v347
          %v467 = vsub.f32 %v413, %v349
          %v468 = vsub.f32 %v415, %v351
          %v469 = vsub.f32 %v417, %v353
          %v470 = vsub.f32 %v419, %v355
          %v471 = vsub.f32 %v421, %v357
          %v472 = vsub.f32 %v423, %v359
          %v473 = vsub.f32 %v425, %v361
          %v474 = vsub.f32 %v427, %v363
          %v475 = vsub.f32 %v429, %v365
          %v476 = vsub.f32 %v431, %v367
          %v477 = vsub.f32 %v433, %v369
          %v478 = vsub.f32 %v435, %v371
          %v479 = vsub.f32 %v437, %v373
          %v480 = vsub.f32 %v439, %v375
          %v481 = vsub.f32 %v441, %v377
          %v482 = vsub.f32 %v443, %v379
          %v483 = vsub.f32 %v445, %v381
          %v484 = vsub.f32 %v447, %v383
          %v485 = vsub.f32 %v449, %v385
          %v486 = vsub.f32 %v451, %v387
          %v487 = vsub.f32 %v453, %v389
          %v488 = vsub.f32 %v455, %v391
          %v489 = vsub.f32 %v457, %v393
          %v491 = vlaneseq
          %v492 = vshrl.u32 %v491, 7
          %v493 = vsub.s32 0, %v492
          %v494 = vrot.slane %v329, %v493
          %v496 = vrcp.pop %v494
          %v497 = vmul.f32 %v458, %v496
          %v498 = vmul.f32 %v459, %v496
          %v499 = vmul.f32 %v460, %v496
          %v500 = vmul.f32 %v461, %v496
          %v501 = vmul.f32 %v462, %v496
          %v502 = vmul.f32 %v463, %v496
          %v503 = vmul.f32 %v464, %v496
          %v504 = vmul.f32 %v465, %v496
          %v505 = vmul.f32 %v466, %v496
          %v506 = vmul.f32 %v467, %v496
          %v507 = vmul.f32 %v468, %v496
          %v508 = vmul.f32 %v469, %v496
          %v509 = vmul.f32 %v470, %v496
          %v510 = vmul.f32 %v471, %v496
          %v511 = vmul.f32 %v472, %v496
          %v512 = vmul.f32 %v473, %v496
          %v513 = vmul.f32 %v474, %v496
          %v514 = vmul.f32 %v475, %v496
          %v515 = vmul.f32 %v476, %v496
          %v516 = vmul.f32 %v477, %v496
          %v517 = vmul.f32 %v478, %v496
          %v518 = vmul.f32 %v479, %v496
          %v519 = vmul.f32 %v480, %v496
          %v520 = vmul.f32 %v481, %v496
          %v521 = vmul.f32 %v482, %v496
          %v522 = vmul.f32 %v483, %v496
          %v523 = vmul.f32 %v484, %v496
          %v524 = vmul.f32 %v485, %v496
          %v525 = vmul.f32 %v486, %v496
          %v526 = vmul.f32 %v487, %v496
          %v527 = vmul.f32 %v488, %v496
          %v528 = vmul.f32 %v489, %v496
          %v529 = vmax.f32 %v497, 1e-05
          %v530 = vmax.f32 %v498, 1e-05
          %v531 = vmax.f32 %v499, 1e-05
          %v532 = vmax.f32 %v500, 1e-05
          %v533 = vmax.f32 %v501, 1e-05
          %v534 = vmax.f32 %v502, 1e-05
          %v535 = vmax.f32 %v503, 1e-05
          %v536 = vmax.f32 %v504, 1e-05
          %v537 = vmax.f32 %v505, 1e-05
          %v538 = vmax.f32 %v506, 1e-05
          %v539 = vmax.f32 %v507, 1e-05
          %v540 = vmax.f32 %v508, 1e-05
          %v541 = vmax.f32 %v509, 1e-05
          %v542 = vmax.f32 %v510, 1e-05
          %v543 = vmax.f32 %v511, 1e-05
          %v544 = vmax.f32 %v512, 1e-05
          %v545 = vmax.f32 %v513, 1e-05
          %v546 = vmax.f32 %v514, 1e-05
          %v547 = vmax.f32 %v515, 1e-05
          %v548 = vmax.f32 %v516, 1e-05
          %v549 = vmax.f32 %v517, 1e-05
          %v550 = vmax.f32 %v518, 1e-05
          %v551 = vmax.f32 %v519, 1e-05
          %v552 = vmax.f32 %v520, 1e-05
          %v553 = vmax.f32 %v521, 1e-05
          %v554 = vmax.f32 %v522, 1e-05
          %v555 = vmax.f32 %v523, 1e-05
          %v556 = vmax.f32 %v524, 1e-05
          %v557 = vmax.f32 %v525, 1e-05
          %v558 = vmax.f32 %v526, 1e-05
          %v559 = vmax.f32 %v527, 1e-05
          %v560 = vmax.f32 %v528, 1e-05
          %v561 = vrcp.pop %v529
          %v562 = vmul.f32 1.0, %v561
          %v563 = vrcp.pop %v530
          %v564 = vmul.f32 1.0, %v563
          %v565 = vrcp.pop %v531
          %v566 = vmul.f32 1.0, %v565
          %v567 = vrcp.pop %v532
          %v568 = vmul.f32 1.0, %v567
          %v569 = vrcp.pop %v533
          %v570 = vmul.f32 1.0, %v569
          %v571 = vrcp.pop %v534
          %v572 = vmul.f32 1.0, %v571
          %v573 = vrcp.pop %v535
          %v574 = vmul.f32 1.0, %v573
          %v575 = vrcp.pop %v536
          %v576 = vmul.f32 1.0, %v575
          %v577 = vrcp.pop %v537
          %v578 = vmul.f32 1.0, %v577
          %v579 = vrcp.pop %v538
          %v580 = vmul.f32 1.0, %v579
          %v581 = vrcp.pop %v539
          %v582 = vmul.f32 1.0, %v581
          %v583 = vrcp.pop %v540
          %v584 = vmul.f32 1.0, %v583
          %v585 = vrcp.pop %v541
          %v586 = vmul.f32 1.0, %v585
          %v587 = vrcp.pop %v542
          %v588 = vmul.f32 1.0, %v587
          %v589 = vrcp.pop %v543
          %v590 = vmul.f32 1.0, %v589
          %v591 = vrcp.pop %v544
          %v592 = vmul.f32 1.0, %v591
          %v593 = vrcp.pop %v545
          %v594 = vmul.f32 1.0, %v593
          %v595 = vrcp.pop %v546
          %v596 = vmul.f32 1.0, %v595
          %v597 = vrcp.pop %v547
          %v598 = vmul.f32 1.0, %v597
          %v599 = vrcp.pop %v548
          %v600 = vmul.f32 1.0, %v599
          %v601 = vrcp.pop %v549
          %v602 = vmul.f32 1.0, %v601
          %v603 = vrcp.pop %v550
          %v604 = vmul.f32 1.0, %v603
          %v605 = vrcp.pop %v551
          %v606 = vmul.f32 1.0, %v605
          %v607 = vrcp.pop %v552
          %v608 = vmul.f32 1.0, %v607
          %v609 = vrcp.pop %v553
          %v610 = vmul.f32 1.0, %v609
          %v611 = vrcp.pop %v554
          %v612 = vmul.f32 1.0, %v611
          %v613 = vrcp.pop %v555
          %v614 = vmul.f32 1.0, %v613
          %v615 = vrcp.pop %v556
          %v616 = vmul.f32 1.0, %v615
          %v617 = vrcp.pop %v557
          %v618 = vmul.f32 1.0, %v617
          %v619 = vrcp.pop %v558
          %v620 = vmul.f32 1.0, %v619
          %v621 = vrcp.pop %v559
          %v622 = vmul.f32 1.0, %v621
          %v623 = vrcp.pop %v560
          %v624 = vmul.f32 1.0, %v623
          %v625 = vsub.f32 0.0, %v331
          %v626 = vsub.f32 0.0, %v333
          %v627 = vsub.f32 0.0, %v335
          %v628 = vsub.f32 0.0, %v337
          %v629 = vsub.f32 0.0, %v339
          %v630 = vsub.f32 0.0, %v341
          %v631 = vsub.f32 0.0, %v343
          %v632 = vsub.f32 0.0, %v345
          %v633 = vsub.f32 0.0, %v347
          %v634 = vsub.f32 0.0, %v349
          %v635 = vsub.f32 0.0, %v351
          %v636 = vsub.f32 0.0, %v353
          %v637 = vsub.f32 0.0, %v355
          %v638 = vsub.f32 0.0, %v357
          %v639 = vsub.f32 0.0, %v359
          %v640 = vsub.f32 0.0, %v361
          %v641 = vsub.f32 0.0, %v363
          %v642 = vsub.f32 0.0, %v365
          %v643 = vsub.f32 0.0, %v367
          %v644 = vsub.f32 0.0, %v369
          %v645 = vsub.f32 0.0, %v371
          %v646 = vsub.f32 0.0, %v373
          %v647 = vsub.f32 0.0, %v375
          %v648 = vsub.f32 0.0, %v377
          %v649 = vsub.f32 0.0, %v379
          %v650 = vsub.f32 0.0, %v381
          %v651 = vsub.f32 0.0, %v383
          %v652 = vsub.f32 0.0, %v385
          %v653 = vsub.f32 0.0, %v387
          %v654 = vsub.f32 0.0, %v389
          %v655 = vsub.f32 0.0, %v391
          %v656 = vsub.f32 0.0, %v393
          %v657 = vmul.f32 %v625, %v562
          %v658 = vmul.f32 %v626, %v564
          %v659 = vmul.f32 %v627, %v566
          %v660 = vmul.f32 %v628, %v568
          %v661 = vmul.f32 %v629, %v570
          %v662 = vmul.f32 %v630, %v572
          %v663 = vmul.f32 %v631, %v574
          %v664 = vmul.f32 %v632, %v576
          %v665 = vmul.f32 %v633, %v578
          %v666 = vmul.f32 %v634, %v580
          %v667 = vmul.f32 %v635, %v582
          %v668 = vmul.f32 %v636, %v584
          %v669 = vmul.f32 %v637, %v586
          %v670 = vmul.f32 %v638, %v588
          %v671 = vmul.f32 %v639, %v590
          %v672 = vmul.f32 %v640, %v592
          %v673 = vmul.f32 %v641, %v594
          %v674 = vmul.f32 %v642, %v596
          %v675 = vmul.f32 %v643, %v598
          %v676 = vmul.f32 %v644, %v600
          %v677 = vmul.f32 %v645, %v602
          %v678 = vmul.f32 %v646, %v604
          %v679 = vmul.f32 %v647, %v606
          %v680 = vmul.f32 %v648, %v608
          %v681 = vmul.f32 %v649, %v610
          %v682 = vmul.f32 %v650, %v612
          %v683 = vmul.f32 %v651, %v614
          %v684 = vmul.f32 %v652, %v616
          %v685 = vmul.f32 %v653, %v618
          %v686 = vmul.f32 %v654, %v620
          %v687 = vmul.f32 %v655, %v622
          %v688 = vmul.f32 %v656, %v624
          %v689 = vmax.f32 %v657, -10000.0
          %v690 = vmax.f32 %v658, -10000.0
          %v691 = vmax.f32 %v659, -10000.0
          %v692 = vmax.f32 %v660, -10000.0
          %v693 = vmax.f32 %v661, -10000.0
          %v694 = vmax.f32 %v662, -10000.0
          %v695 = vmax.f32 %v663, -10000.0
          %v696 = vmax.f32 %v664, -10000.0
          %v697 = vmax.f32 %v665, -10000.0
          %v698 = vmax.f32 %v666, -10000.0
          %v699 = vmax.f32 %v667, -10000.0
          %v700 = vmax.f32 %v668, -10000.0
          %v701 = vmax.f32 %v669, -10000.0
          %v702 = vmax.f32 %v670, -10000.0
          %v703 = vmax.f32 %v671, -10000.0
          %v704 = vmax.f32 %v672, -10000.0
          %v705 = vmax.f32 %v673, -10000.0
          %v706 = vmax.f32 %v674, -10000.0
          %v707 = vmax.f32 %v675, -10000.0
          %v708 = vmax.f32 %v676, -10000.0
          %v709 = vmax.f32 %v677, -10000.0
          %v710 = vmax.f32 %v678, -10000.0
          %v711 = vmax.f32 %v679, -10000.0
          %v712 = vmax.f32 %v680, -10000.0
          %v713 = vmax.f32 %v681, -10000.0
          %v714 = vmax.f32 %v682, -10000.0
          %v715 = vmax.f32 %v683, -10000.0
          %v716 = vmax.f32 %v684, -10000.0
          %v717 = vmax.f32 %v685, -10000.0
          %v718 = vmax.f32 %v686, -10000.0
          %v719 = vmax.f32 %v687, -10000.0
          %v720 = vmax.f32 %v688, -10000.0
          %v721 = vmin.f32 %v689, 10000.0
          %v722 = vmin.f32 %v690, 10000.0
          %v723 = vmin.f32 %v691, 10000.0
          %v724 = vmin.f32 %v692, 10000.0
          %v725 = vmin.f32 %v693, 10000.0
          %v726 = vmin.f32 %v694, 10000.0
          %v727 = vmin.f32 %v695, 10000.0
          %v728 = vmin.f32 %v696, 10000.0
          %v729 = vmin.f32 %v697, 10000.0
          %v730 = vmin.f32 %v698, 10000.0
          %v731 = vmin.f32 %v699, 10000.0
          %v732 = vmin.f32 %v700, 10000.0
          %v733 = vmin.f32 %v701, 10000.0
          %v734 = vmin.f32 %v702, 10000.0
          %v735 = vmin.f32 %v703, 10000.0
          %v736 = vmin.f32 %v704, 10000.0
          %v737 = vmin.f32 %v705, 10000.0
          %v738 = vmin.f32 %v706, 10000.0
          %v739 = vmin.f32 %v707, 10000.0
          %v740 = vmin.f32 %v708, 10000.0
          %v741 = vmin.f32 %v709, 10000.0
          %v742 = vmin.f32 %v710, 10000.0
          %v743 = vmin.f32 %v711, 10000.0
          %v744 = vmin.f32 %v712, 10000.0
          %v745 = vmin.f32 %v713, 10000.0
          %v746 = vmin.f32 %v714, 10000.0
          %v747 = vmin.f32 %v715, 10000.0
          %v748 = vmin.f32 %v716, 10000.0
          %v749 = vmin.f32 %v717, 10000.0
          %v750 = vmin.f32 %v718, 10000.0
          %v751 = vmin.f32 %v719, 10000.0
          %v752 = vmin.f32 %v720, 10000.0
          %v753 = vround.ne.pseudo %v721
          %v754 = vround.ne.pseudo %v722
          %v755 = vround.ne.pseudo %v723
          %v756 = vround.ne.pseudo %v724
          %v757 = vround.ne.pseudo %v725
          %v758 = vround.ne.pseudo %v726
          %v759 = vround.ne.pseudo %v727
          %v760 = vround.ne.pseudo %v728
          %v761 = vround.ne.pseudo %v729
          %v762 = vround.ne.pseudo %v730
          %v763 = vround.ne.pseudo %v731
          %v764 = vround.ne.pseudo %v732
          %v765 = vround.ne.pseudo %v733
          %v766 = vround.ne.pseudo %v734
          %v767 = vround.ne.pseudo %v735
          %v768 = vround.ne.pseudo %v736
          %v769 = vround.ne.pseudo %v737
          %v770 = vround.ne.pseudo %v738
          %v771 = vround.ne.pseudo %v739
          %v772 = vround.ne.pseudo %v740
          %v773 = vround.ne.pseudo %v741
          %v774 = vround.ne.pseudo %v742
          %v775 = vround.ne.pseudo %v743
          %v776 = vround.ne.pseudo %v744
          %v777 = vround.ne.pseudo %v745
          %v778 = vround.ne.pseudo %v746
          %v779 = vround.ne.pseudo %v747
          %v780 = vround.ne.pseudo %v748
          %v781 = vround.ne.pseudo %v749
          %v782 = vround.ne.pseudo %v750
          %v783 = vround.ne.pseudo %v751
          %v784 = vround.ne.pseudo %v752
          %v785 = vmul.f32 %v297, %v562
          %v786 = vmul.f32 %v298, %v564
          %v787 = vmul.f32 %v299, %v566
          %v788 = vmul.f32 %v300, %v568
          %v789 = vmul.f32 %v301, %v570
          %v790 = vmul.f32 %v302, %v572
          %v791 = vmul.f32 %v303, %v574
          %v792 = vmul.f32 %v304, %v576
          %v793 = vmul.f32 %v305, %v578
          %v794 = vmul.f32 %v306, %v580
          %v795 = vmul.f32 %v307, %v582
          %v796 = vmul.f32 %v308, %v584
          %v797 = vmul.f32 %v309, %v586
          %v798 = vmul.f32 %v310, %v588
          %v799 = vmul.f32 %v311, %v590
          %v800 = vmul.f32 %v312, %v592
          %v801 = vmul.f32 %v313, %v594
          %v802 = vmul.f32 %v314, %v596
          %v803 = vmul.f32 %v315, %v598
          %v804 = vmul.f32 %v316, %v600
          %v805 = vmul.f32 %v317, %v602
          %v806 = vmul.f32 %v318, %v604
          %v807 = vmul.f32 %v319, %v606
          %v808 = vmul.f32 %v320, %v608
          %v809 = vmul.f32 %v321, %v610
          %v810 = vmul.f32 %v322, %v612
          %v811 = vmul.f32 %v323, %v614
          %v812 = vmul.f32 %v324, %v616
          %v813 = vmul.f32 %v325, %v618
          %v814 = vmul.f32 %v326, %v620
          %v815 = vmul.f32 %v327, %v622
          %v816 = vmul.f32 %v328, %v624
          %v817 = vround.ne.pseudo %v785
          %v818 = vround.ne.pseudo %v786
          %v819 = vround.ne.pseudo %v787
          %v820 = vround.ne.pseudo %v788
          %v821 = vround.ne.pseudo %v789
          %v822 = vround.ne.pseudo %v790
          %v823 = vround.ne.pseudo %v791
          %v824 = vround.ne.pseudo %v792
          %v825 = vround.ne.pseudo %v793
          %v826 = vround.ne.pseudo %v794
          %v827 = vround.ne.pseudo %v795
          %v828 = vround.ne.pseudo %v796
          %v829 = vround.ne.pseudo %v797
          %v830 = vround.ne.pseudo %v798
          %v831 = vround.ne.pseudo %v799
          %v832 = vround.ne.pseudo %v800
          %v833 = vround.ne.pseudo %v801
          %v834 = vround.ne.pseudo %v802
          %v835 = vround.ne.pseudo %v803
          %v836 = vround.ne.pseudo %v804
          %v837 = vround.ne.pseudo %v805
          %v838 = vround.ne.pseudo %v806
          %v839 = vround.ne.pseudo %v807
          %v840 = vround.ne.pseudo %v808
          %v841 = vround.ne.pseudo %v809
          %v842 = vround.ne.pseudo %v810
          %v843 = vround.ne.pseudo %v811
          %v844 = vround.ne.pseudo %v812
          %v845 = vround.ne.pseudo %v813
          %v846 = vround.ne.pseudo %v814
          %v847 = vround.ne.pseudo %v815
          %v848 = vround.ne.pseudo %v816
          %v849 = vadd.f32 %v817, %v753
          %v850 = vadd.f32 %v818, %v754
          %v851 = vadd.f32 %v819, %v755
          %v852 = vadd.f32 %v820, %v756
          %v853 = vadd.f32 %v821, %v757
          %v854 = vadd.f32 %v822, %v758
          %v855 = vadd.f32 %v823, %v759
          %v856 = vadd.f32 %v824, %v760
          %v857 = vadd.f32 %v825, %v761
          %v858 = vadd.f32 %v826, %v762
          %v859 = vadd.f32 %v827, %v763
          %v860 = vadd.f32 %v828, %v764
          %v861 = vadd.f32 %v829, %v765
          %v862 = vadd.f32 %v830, %v766
          %v863 = vadd.f32 %v831, %v767
          %v864 = vadd.f32 %v832, %v768
          %v865 = vadd.f32 %v833, %v769
          %v866 = vadd.f32 %v834, %v770
          %v867 = vadd.f32 %v835, %v771
          %v868 = vadd.f32 %v836, %v772
          %v869 = vadd.f32 %v837, %v773
          %v870 = vadd.f32 %v838, %v774
          %v871 = vadd.f32 %v839, %v775
          %v872 = vadd.f32 %v840, %v776
          %v873 = vadd.f32 %v841, %v777
          %v874 = vadd.f32 %v842, %v778
          %v875 = vadd.f32 %v843, %v779
          %v876 = vadd.f32 %v844, %v780
          %v877 = vadd.f32 %v845, %v781
          %v878 = vadd.f32 %v846, %v782
          %v879 = vadd.f32 %v847, %v783
          %v880 = vadd.f32 %v848, %v784
          %v881 = vmax.f32 %v849, 0.0
          %v882 = vmax.f32 %v850, 0.0
          %v883 = vmax.f32 %v851, 0.0
          %v884 = vmax.f32 %v852, 0.0
          %v885 = vmax.f32 %v853, 0.0
          %v886 = vmax.f32 %v854, 0.0
          %v887 = vmax.f32 %v855, 0.0
          %v888 = vmax.f32 %v856, 0.0
          %v889 = vmax.f32 %v857, 0.0
          %v890 = vmax.f32 %v858, 0.0
          %v891 = vmax.f32 %v859, 0.0
          %v892 = vmax.f32 %v860, 0.0
          %v893 = vmax.f32 %v861, 0.0
          %v894 = vmax.f32 %v862, 0.0
          %v895 = vmax.f32 %v863, 0.0
          %v896 = vmax.f32 %v864, 0.0
          %v897 = vmax.f32 %v865, 0.0
          %v898 = vmax.f32 %v866, 0.0
          %v899 = vmax.f32 %v867, 0.0
          %v900 = vmax.f32 %v868, 0.0
          %v901 = vmax.f32 %v869, 0.0
          %v902 = vmax.f32 %v870, 0.0
          %v903 = vmax.f32 %v871, 0.0
          %v904 = vmax.f32 %v872, 0.0
          %v905 = vmax.f32 %v873, 0.0
          %v906 = vmax.f32 %v874, 0.0
          %v907 = vmax.f32 %v875, 0.0
          %v908 = vmax.f32 %v876, 0.0
          %v909 = vmax.f32 %v877, 0.0
          %v910 = vmax.f32 %v878, 0.0
          %v911 = vmax.f32 %v879, 0.0
          %v912 = vmax.f32 %v880, 0.0
          %v913 = vmin.f32 %v494, %v881
          %v914 = vmin.f32 %v494, %v882
          %v915 = vmin.f32 %v494, %v883
          %v916 = vmin.f32 %v494, %v884
          %v917 = vmin.f32 %v494, %v885
          %v918 = vmin.f32 %v494, %v886
          %v919 = vmin.f32 %v494, %v887
          %v920 = vmin.f32 %v494, %v888
          %v921 = vmin.f32 %v494, %v889
          %v922 = vmin.f32 %v494, %v890
          %v923 = vmin.f32 %v494, %v891
          %v924 = vmin.f32 %v494, %v892
          %v925 = vmin.f32 %v494, %v893
          %v926 = vmin.f32 %v494, %v894
          %v927 = vmin.f32 %v494, %v895
          %v928 = vmin.f32 %v494, %v896
          %v929 = vmin.f32 %v494, %v897
          %v930 = vmin.f32 %v494, %v898
          %v931 = vmin.f32 %v494, %v899
          %v932 = vmin.f32 %v494, %v900
          %v933 = vmin.f32 %v494, %v901
          %v934 = vmin.f32 %v494, %v902
          %v935 = vmin.f32 %v494, %v903
          %v936 = vmin.f32 %v494, %v904
          %v937 = vmin.f32 %v494, %v905
          %v938 = vmin.f32 %v494, %v906
          %v939 = vmin.f32 %v494, %v907
          %v940 = vmin.f32 %v494, %v908
          %v941 = vmin.f32 %v494, %v909
          %v942 = vmin.f32 %v494, %v910
          %v943 = vmin.f32 %v494, %v911
          %v944 = vmin.f32 %v494, %v912
          %v945 = vsub.f32 %v913, %v753
          %v946 = vsub.f32 %v914, %v754
          %v947 = vsub.f32 %v915, %v755
          %v948 = vsub.f32 %v916, %v756
          %v949 = vsub.f32 %v917, %v757
          %v950 = vsub.f32 %v918, %v758
          %v951 = vsub.f32 %v919, %v759
          %v952 = vsub.f32 %v920, %v760
          %v953 = vsub.f32 %v921, %v761
          %v954 = vsub.f32 %v922, %v762
          %v955 = vsub.f32 %v923, %v763
          %v956 = vsub.f32 %v924, %v764
          %v957 = vsub.f32 %v925, %v765
          %v958 = vsub.f32 %v926, %v766
          %v959 = vsub.f32 %v927, %v767
          %v960 = vsub.f32 %v928, %v768
          %v961 = vsub.f32 %v929, %v769
          %v962 = vsub.f32 %v930, %v770
          %v963 = vsub.f32 %v931, %v771
          %v964 = vsub.f32 %v932, %v772
          %v965 = vsub.f32 %v933, %v773
          %v966 = vsub.f32 %v934, %v774
          %v967 = vsub.f32 %v935, %v775
          %v968 = vsub.f32 %v936, %v776
          %v969 = vsub.f32 %v937, %v777
          %v970 = vsub.f32 %v938, %v778
          %v971 = vsub.f32 %v939, %v779
          %v972 = vsub.f32 %v940, %v780
          %v973 = vsub.f32 %v941, %v781
          %v974 = vsub.f32 %v942, %v782
          %v975 = vsub.f32 %v943, %v783
          %v976 = vsub.f32 %v944, %v784
          %v977 = vmul.f32 %v945, %v529
          %v978 = vmul.f32 %v946, %v530
          %v979 = vmul.f32 %v947, %v531
          %v980 = vmul.f32 %v948, %v532
          %v981 = vmul.f32 %v949, %v533
          %v982 = vmul.f32 %v950, %v534
          %v983 = vmul.f32 %v951, %v535
          %v984 = vmul.f32 %v952, %v536
          %v985 = vmul.f32 %v953, %v537
          %v986 = vmul.f32 %v954, %v538
          %v987 = vmul.f32 %v955, %v539
          %v988 = vmul.f32 %v956, %v540
          %v989 = vmul.f32 %v957, %v541
          %v990 = vmul.f32 %v958, %v542
          %v991 = vmul.f32 %v959, %v543
          %v992 = vmul.f32 %v960, %v544
          %v993 = vmul.f32 %v961, %v545
          %v994 = vmul.f32 %v962, %v546
          %v995 = vmul.f32 %v963, %v547
          %v996 = vmul.f32 %v964, %v548
          %v997 = vmul.f32 %v965, %v549
          %v998 = vmul.f32 %v966, %v550
          %v999 = vmul.f32 %v967, %v551
          %v1000 = vmul.f32 %v968, %v552
          %v1001 = vmul.f32 %v969, %v553
          %v1002 = vmul.f32 %v970, %v554
          %v1003 = vmul.f32 %v971, %v555
          %v1004 = vmul.f32 %v972, %v556
          %v1005 = vmul.f32 %v973, %v557
          %v1006 = vmul.f32 %v974, %v558
          %v1007 = vmul.f32 %v975, %v559
          %v1008 = vmul.f32 %v976, %v560
          %v1009 = vpack.c.bf16 %v978, %v977
          %v1010 = vpack.c.bf16 %v980, %v979
          %v1011 = vpack.c.bf16 %v982, %v981
          %v1012 = vpack.c.bf16 %v984, %v983
          %v1013 = vpack.c.bf16 %v986, %v985
          %v1014 = vpack.c.bf16 %v988, %v987
          %v1015 = vpack.c.bf16 %v990, %v989
          %v1016 = vpack.c.bf16 %v992, %v991
          %v1017 = vpack.c.bf16 %v994, %v993
          %v1018 = vpack.c.bf16 %v996, %v995
          %v1019 = vpack.c.bf16 %v998, %v997
          %v1020 = vpack.c.bf16 %v1000, %v999
          %v1021 = vpack.c.bf16 %v1002, %v1001
          %v1022 = vpack.c.bf16 %v1004, %v1003
          %v1023 = vpack.c.bf16 %v1006, %v1005
          %v1024 = vpack.c.bf16 %v1008, %v1007
          %v1041 = vunpack.c.l.b16 %v1009
          %v1042 = vunpack.c.h.b16 %v1009
          %v1043 = vunpack.c.l.b16 %v1010
          %v1044 = vunpack.c.h.b16 %v1010
          %v1045 = vunpack.c.l.b16 %v1011
          %v1046 = vunpack.c.h.b16 %v1011
          %v1047 = vunpack.c.l.b16 %v1012
          %v1048 = vunpack.c.h.b16 %v1012
          %v1049 = vunpack.c.l.b16 %v1013
          %v1050 = vunpack.c.h.b16 %v1013
          %v1051 = vunpack.c.l.b16 %v1014
          %v1052 = vunpack.c.h.b16 %v1014
          %v1053 = vunpack.c.l.b16 %v1015
          %v1054 = vunpack.c.h.b16 %v1015
          %v1055 = vunpack.c.l.b16 %v1016
          %v1056 = vunpack.c.h.b16 %v1016
          %v1057 = vunpack.c.l.b16 %v1017
          %v1058 = vunpack.c.h.b16 %v1017
          %v1059 = vunpack.c.l.b16 %v1018
          %v1060 = vunpack.c.h.b16 %v1018
          %v1061 = vunpack.c.l.b16 %v1019
          %v1062 = vunpack.c.h.b16 %v1019
          %v1063 = vunpack.c.l.b16 %v1020
          %v1064 = vunpack.c.h.b16 %v1020
          %v1065 = vunpack.c.l.b16 %v1021
          %v1066 = vunpack.c.h.b16 %v1021
          %v1067 = vunpack.c.l.b16 %v1022
          %v1068 = vunpack.c.h.b16 %v1022
          %v1069 = vunpack.c.l.b16 %v1023
          %v1070 = vunpack.c.h.b16 %v1023
          %v1071 = vunpack.c.l.b16 %v1024
          %v1072 = vunpack.c.h.b16 %v1024
          %v1073 = vpack.c.b16 %v1041, %v1041
          %v1074 = vpack.c.b16 %v1042, %v1042
          %v1075 = vpack.c.b16 %v1043, %v1043
          %v1076 = vpack.c.b16 %v1044, %v1044
          %v1077 = vpack.c.b16 %v1045, %v1045
          %v1078 = vpack.c.b16 %v1046, %v1046
          %v1079 = vpack.c.b16 %v1047, %v1047
          %v1080 = vpack.c.b16 %v1048, %v1048
          %v1081 = vpack.c.b16 %v1049, %v1049
          %v1082 = vpack.c.b16 %v1050, %v1050
          %v1083 = vpack.c.b16 %v1051, %v1051
          %v1084 = vpack.c.b16 %v1052, %v1052
          %v1085 = vpack.c.b16 %v1053, %v1053
          %v1086 = vpack.c.b16 %v1054, %v1054
          %v1087 = vpack.c.b16 %v1055, %v1055
          %v1088 = vpack.c.b16 %v1056, %v1056
          %v1089 = vpack.c.b16 %v1057, %v1057
          %v1090 = vpack.c.b16 %v1058, %v1058
          %v1091 = vpack.c.b16 %v1059, %v1059
          %v1092 = vpack.c.b16 %v1060, %v1060
          %v1093 = vpack.c.b16 %v1061, %v1061
          %v1094 = vpack.c.b16 %v1062, %v1062
          %v1095 = vpack.c.b16 %v1063, %v1063
          %v1096 = vpack.c.b16 %v1064, %v1064
          %v1097 = vpack.c.b16 %v1065, %v1065
          %v1098 = vpack.c.b16 %v1066, %v1066
          %v1099 = vpack.c.b16 %v1067, %v1067
          %v1100 = vpack.c.b16 %v1068, %v1068
          %v1101 = vpack.c.b16 %v1069, %v1069
          %v1102 = vpack.c.b16 %v1070, %v1070
          %v1103 = vpack.c.b16 %v1071, %v1071
          %v1104 = vpack.c.b16 %v1072, %v1072
          %1137 = vst [vmem:[#allocation2] sm:$0xf] %v1073
          %1138 = vst [vmem:[#allocation2 + $0x4] sm:$0xf] %v1074
          %1139 = vst [vmem:[#allocation2 + $0x8] sm:$0xf] %v1075
          %1140 = vst [vmem:[#allocation2 + $0xc] sm:$0xf] %v1076
          %1141 = vst [vmem:[#allocation2 + $0x10] sm:$0xf] %v1077
          %1142 = vst [vmem:[#allocation2 + $0x14] sm:$0xf] %v1078
          %1143 = vst [vmem:[#allocation2 + $0x18] sm:$0xf] %v1079
          %1144 = vst [vmem:[#allocation2 + $0x1c] sm:$0xf] %v1080
          %1145 = vst [vmem:[#allocation2 + $0x20] sm:$0xf] %v1081
          %1146 = vst [vmem:[#allocation2 + $0x24] sm:$0xf] %v1082
          %1147 = vst [vmem:[#allocation2 + $0x28] sm:$0xf] %v1083
          %1148 = vst [vmem:[#allocation2 + $0x2c] sm:$0xf] %v1084
          %1149 = vst [vmem:[#allocation2 + $0x30] sm:$0xf] %v1085
          %1150 = vst [vmem:[#allocation2 + $0x34] sm:$0xf] %v1086
          %1151 = vst [vmem:[#allocation2 + $0x38] sm:$0xf] %v1087
          %1152 = vst [vmem:[#allocation2 + $0x3c] sm:$0xf] %v1088
          %1153 = vst [vmem:[#allocation2 + $0x40] sm:$0xf] %v1089
          %1154 = vst [vmem:[#allocation2 + $0x44] sm:$0xf] %v1090
          %1155 = vst [vmem:[#allocation2 + $0x48] sm:$0xf] %v1091
          %1156 = vst [vmem:[#allocation2 + $0x4c] sm:$0xf] %v1092
          %1157 = vst [vmem:[#allocation2 + $0x50] sm:$0xf] %v1093
          %1158 = vst [vmem:[#allocation2 + $0x54] sm:$0xf] %v1094
          %1159 = vst [vmem:[#allocation2 + $0x58] sm:$0xf] %v1095
          %1160 = vst [vmem:[#allocation2 + $0x5c] sm:$0xf] %v1096
          %1161 = vst [vmem:[#allocation2 + $0x60] sm:$0xf] %v1097
          %1162 = vst [vmem:[#allocation2 + $0x64] sm:$0xf] %v1098
          %1163 = vst [vmem:[#allocation2 + $0x68] sm:$0xf] %v1099
          %1164 = vst [vmem:[#allocation2 + $0x6c] sm:$0xf] %v1100
          %1165 = vst [vmem:[#allocation2 + $0x70] sm:$0xf] %v1101
          %1166 = vst [vmem:[#allocation2 + $0x74] sm:$0xf] %v1102
          %1167 = vst [vmem:[#allocation2 + $0x78] sm:$0xf] %v1103
          %1168 = vst [vmem:[#allocation2 + $0x7c] sm:$0xf] %v1104
        $region48: #{tpu_custom_call.1} parent=31 // pred_fallthru
          _
        %v1169 = vld [vmem:[%s221] sm:$0xff]
        %v1170 = vld [vmem:[%s221 + $0x8] sm:$0xff]
        %v1171 = vld [vmem:[%s221 + $0x10] sm:$0xff]
        %v1172 = vld [vmem:[%s221 + $0x18] sm:$0xff]
        %v1173 = vld [vmem:[%s221 + $0x20] sm:$0xff]
        %v1174 = vld [vmem:[%s221 + $0x28] sm:$0xff]
        %v1175 = vld [vmem:[%s221 + $0x30] sm:$0xff]
        %v1176 = vld [vmem:[%s221 + $0x38] sm:$0xff]
        %v1177 = vld [vmem:[%s221 + $0x40] sm:$0xff]
        %v1178 = vld [vmem:[%s221 + $0x48] sm:$0xff]
        %v1179 = vld [vmem:[%s221 + $0x50] sm:$0xff]
        %v1180 = vld [vmem:[%s221 + $0x58] sm:$0xff]
        %v1181 = vld [vmem:[%s221 + $0x60] sm:$0xff]
        %v1182 = vld [vmem:[%s221 + $0x68] sm:$0xff]
        %v1183 = vld [vmem:[%s221 + $0x70] sm:$0xff]
        %v1184 = vld [vmem:[%s221 + $0x78] sm:$0xff]
        %v1185 = vunpack.c.l.bf16 %v1169
        %v1186 = vunpack.c.h.bf16 %v1169
        %v1187 = vunpack.c.l.bf16 %v1170
        %v1188 = vunpack.c.h.bf16 %v1170
        %v1189 = vunpack.c.l.bf16 %v1171
        %v1190 = vunpack.c.h.bf16 %v1171
        %v1191 = vunpack.c.l.bf16 %v1172
        %v1192 = vunpack.c.h.bf16 %v1172
        %v1193 = vunpack.c.l.bf16 %v1173
        %v1194 = vunpack.c.h.bf16 %v1173
        %v1195 = vunpack.c.l.bf16 %v1174
        %v1196 = vunpack.c.h.bf16 %v1174
        %v1197 = vunpack.c.l.bf16 %v1175
        %v1198 = vunpack.c.h.bf16 %v1175
        %v1199 = vunpack.c.l.bf16 %v1176
        %v1200 = vunpack.c.h.bf16 %v1176
        %v1201 = vunpack.c.l.bf16 %v1177
        %v1202 = vunpack.c.h.bf16 %v1177
        %v1203 = vunpack.c.l.bf16 %v1178
        %v1204 = vunpack.c.h.bf16 %v1178
        %v1205 = vunpack.c.l.bf16 %v1179
        %v1206 = vunpack.c.h.bf16 %v1179
        %v1207 = vunpack.c.l.bf16 %v1180
        %v1208 = vunpack.c.h.bf16 %v1180
        %v1209 = vunpack.c.l.bf16 %v1181
        %v1210 = vunpack.c.h.bf16 %v1181
        %v1211 = vunpack.c.l.bf16 %v1182
        %v1212 = vunpack.c.h.bf16 %v1182
        %v1213 = vunpack.c.l.bf16 %v1183
        %v1214 = vunpack.c.h.bf16 %v1183
        %v1215 = vunpack.c.l.bf16 %v1184
        %v1216 = vunpack.c.h.bf16 %v1184
        %v1217 = vmin.f32 %v1185, %v1186
        %1218 = vmin.xlane.f32.xlu0 %v1217
        %v1219 = vpop.xlane.xlu0 %1218
        %v1220 = vmin.f32 %v1187, %v1188
        %1221 = vmin.xlane.f32.xlu0 %v1220
        %v1222 = vpop.xlane.xlu0 %1221
        %v1223 = vmin.f32 %v1189, %v1190
        %1224 = vmin.xlane.f32.xlu0 %v1223
        %v1225 = vpop.xlane.xlu0 %1224
        %v1226 = vmin.f32 %v1191, %v1192
        %1227 = vmin.xlane.f32.xlu0 %v1226
        %v1228 = vpop.xlane.xlu0 %1227
        %v1229 = vmin.f32 %v1193, %v1194
        %1230 = vmin.xlane.f32.xlu0 %v1229
        %v1231 = vpop.xlane.xlu0 %1230
        %v1232 = vmin.f32 %v1195, %v1196
        %1233 = vmin.xlane.f32.xlu0 %v1232
        %v1234 = vpop.xlane.xlu0 %1233
        %v1235 = vmin.f32 %v1197, %v1198
        %1236 = vmin.xlane.f32.xlu0 %v1235
        %v1237 = vpop.xlane.xlu0 %1236
        %v1238 = vmin.f32 %v1199, %v1200
        %1239 = vmin.xlane.f32.xlu0 %v1238
        %v1240 = vpop.xlane.xlu0 %1239
        %v1241 = vmin.f32 %v1201, %v1202
        %1242 = vmin.xlane.f32.xlu0 %v1241
        %v1243 = vpop.xlane.xlu0 %1242
        %v1244 = vmin.f32 %v1203, %v1204
        %1245 = vmin.xlane.f32.xlu0 %v1244
        %v1246 = vpop.xlane.xlu0 %1245
        %v1247 = vmin.f32 %v1205, %v1206
        %1248 = vmin.xlane.f32.xlu0 %v1247
        %v1249 = vpop.xlane.xlu0 %1248
        %v1250 = vmin.f32 %v1207, %v1208
        %1251 = vmin.xlane.f32.xlu0 %v1250
        %v1252 = vpop.xlane.xlu0 %1251
        %v1253 = vmin.f32 %v1209, %v1210
        %1254 = vmin.xlane.f32.xlu0 %v1253
        %v1255 = vpop.xlane.xlu0 %1254
        %v1256 = vmin.f32 %v1211, %v1212
        %1257 = vmin.xlane.f32.xlu0 %v1256
        %v1258 = vpop.xlane.xlu0 %1257
        %v1259 = vmin.f32 %v1213, %v1214
        %1260 = vmin.xlane.f32.xlu0 %v1259
        %v1261 = vpop.xlane.xlu0 %1260
        %v1262 = vmin.f32 %v1215, %v1216
        %1263 = vmin.xlane.f32.xlu0 %v1262
        %v1264 = vpop.xlane.xlu0 %1263
        %v1265 = vmax.f32 %v1185, %v1186
        %1266 = vmax.xlane.f32.xlu0 %v1265
        %v1267 = vpop.xlane.xlu0 %1266
        %v1268 = vmax.f32 %v1187, %v1188
        %1269 = vmax.xlane.f32.xlu0 %v1268
        %v1270 = vpop.xlane.xlu0 %1269
        %v1271 = vmax.f32 %v1189, %v1190
        %1272 = vmax.xlane.f32.xlu0 %v1271
        %v1273 = vpop.xlane.xlu0 %1272
        %v1274 = vmax.f32 %v1191, %v1192
        %1275 = vmax.xlane.f32.xlu0 %v1274
        %v1276 = vpop.xlane.xlu0 %1275
        %v1277 = vmax.f32 %v1193, %v1194
        %1278 = vmax.xlane.f32.xlu0 %v1277
        %v1279 = vpop.xlane.xlu0 %1278
        %v1280 = vmax.f32 %v1195, %v1196
        %1281 = vmax.xlane.f32.xlu0 %v1280
        %v1282 = vpop.xlane.xlu0 %1281
        %v1283 = vmax.f32 %v1197, %v1198
        %1284 = vmax.xlane.f32.xlu0 %v1283
        %v1285 = vpop.xlane.xlu0 %1284
        %v1286 = vmax.f32 %v1199, %v1200
        %1287 = vmax.xlane.f32.xlu0 %v1286
        %v1288 = vpop.xlane.xlu0 %1287
        %v1289 = vmax.f32 %v1201, %v1202
        %1290 = vmax.xlane.f32.xlu0 %v1289
        %v1291 = vpop.xlane.xlu0 %1290
        %v1292 = vmax.f32 %v1203, %v1204
        %1293 = vmax.xlane.f32.xlu0 %v1292
        %v1294 = vpop.xlane.xlu0 %1293
        %v1295 = vmax.f32 %v1205, %v1206
        %1296 = vmax.xlane.f32.xlu0 %v1295
        %v1297 = vpop.xlane.xlu0 %1296
        %v1298 = vmax.f32 %v1207, %v1208
        %1299 = vmax.xlane.f32.xlu0 %v1298
        %v1300 = vpop.xlane.xlu0 %1299
        %v1301 = vmax.f32 %v1209, %v1210
        %1302 = vmax.xlane.f32.xlu0 %v1301
        %v1303 = vpop.xlane.xlu0 %1302
        %v1304 = vmax.f32 %v1211, %v1212
        %1305 = vmax.xlane.f32.xlu0 %v1304
        %v1306 = vpop.xlane.xlu0 %1305
        %v1307 = vmax.f32 %v1213, %v1214
        %1308 = vmax.xlane.f32.xlu0 %v1307
        %v1309 = vpop.xlane.xlu0 %1308
        %v1310 = vmax.f32 %v1215, %v1216
        %1311 = vmax.xlane.f32.xlu0 %v1310
        %v1312 = vpop.xlane.xlu0 %1311
        %v1313 = vsub.f32 %v1267, %v1219
        %v1314 = vsub.f32 %v1270, %v1222
        %v1315 = vsub.f32 %v1273, %v1225
        %v1316 = vsub.f32 %v1276, %v1228
        %v1317 = vsub.f32 %v1279, %v1231
        %v1318 = vsub.f32 %v1282, %v1234
        %v1319 = vsub.f32 %v1285, %v1237
        %v1320 = vsub.f32 %v1288, %v1240
        %v1321 = vsub.f32 %v1291, %v1243
        %v1322 = vsub.f32 %v1294, %v1246
        %v1323 = vsub.f32 %v1297, %v1249
        %v1324 = vsub.f32 %v1300, %v1252
        %v1325 = vsub.f32 %v1303, %v1255
        %v1326 = vsub.f32 %v1306, %v1258
        %v1327 = vsub.f32 %v1309, %v1261
        %v1328 = vsub.f32 %v1312, %v1264
        %v1329 = vrcp.pop 15.0
        %v1330 = vmul.f32 %v1313, %v1329
        %v1331 = vmul.f32 %v1314, %v1329
        %v1332 = vmul.f32 %v1315, %v1329
        %v1333 = vmul.f32 %v1316, %v1329
        %v1334 = vmul.f32 %v1317, %v1329
        %v1335 = vmul.f32 %v1318, %v1329
        %v1336 = vmul.f32 %v1319, %v1329
        %v1337 = vmul.f32 %v1320, %v1329
        %v1338 = vmul.f32 %v1321, %v1329
        %v1339 = vmul.f32 %v1322, %v1329
        %v1340 = vmul.f32 %v1323, %v1329
        %v1341 = vmul.f32 %v1324, %v1329
        %v1342 = vmul.f32 %v1325, %v1329
        %v1343 = vmul.f32 %v1326, %v1329
        %v1344 = vmul.f32 %v1327, %v1329
        %v1345 = vmul.f32 %v1328, %v1329
        %v1346 = vmax.f32 %v1330, 1e-05
        %v1347 = vmax.f32 %v1331, 1e-05
        %v1348 = vmax.f32 %v1332, 1e-05
        %v1349 = vmax.f32 %v1333, 1e-05
        %v1350 = vmax.f32 %v1334, 1e-05
        %v1351 = vmax.f32 %v1335, 1e-05
        %v1352 = vmax.f32 %v1336, 1e-05
        %v1353 = vmax.f32 %v1337, 1e-05
        %v1354 = vmax.f32 %v1338, 1e-05
        %v1355 = vmax.f32 %v1339, 1e-05
        %v1356 = vmax.f32 %v1340, 1e-05
        %v1357 = vmax.f32 %v1341, 1e-05
        %v1358 = vmax.f32 %v1342, 1e-05
        %v1359 = vmax.f32 %v1343, 1e-05
        %v1360 = vmax.f32 %v1344, 1e-05
        %v1361 = vmax.f32 %v1345, 1e-05
        %v1362 = vrcp.pop %v1346
        %v1363 = vmul.f32 1.0, %v1362
        %v1364 = vrcp.pop %v1347
        %v1365 = vmul.f32 1.0, %v1364
        %v1366 = vrcp.pop %v1348
        %v1367 = vmul.f32 1.0, %v1366
        %v1368 = vrcp.pop %v1349
        %v1369 = vmul.f32 1.0, %v1368
        %v1370 = vrcp.pop %v1350
        %v1371 = vmul.f32 1.0, %v1370
        %v1372 = vrcp.pop %v1351
        %v1373 = vmul.f32 1.0, %v1372
        %v1374 = vrcp.pop %v1352
        %v1375 = vmul.f32 1.0, %v1374
        %v1376 = vrcp.pop %v1353
        %v1377 = vmul.f32 1.0, %v1376
        %v1378 = vrcp.pop %v1354
        %v1379 = vmul.f32 1.0, %v1378
        %v1380 = vrcp.pop %v1355
        %v1381 = vmul.f32 1.0, %v1380
        %v1382 = vrcp.pop %v1356
        %v1383 = vmul.f32 1.0, %v1382
        %v1384 = vrcp.pop %v1357
        %v1385 = vmul.f32 1.0, %v1384
        %v1386 = vrcp.pop %v1358
        %v1387 = vmul.f32 1.0, %v1386
        %v1388 = vrcp.pop %v1359
        %v1389 = vmul.f32 1.0, %v1388
        %v1390 = vrcp.pop %v1360
        %v1391 = vmul.f32 1.0, %v1390
        %v1392 = vrcp.pop %v1361
        %v1393 = vmul.f32 1.0, %v1392
        %v1394 = vsub.f32 0.0, %v1219
        %v1395 = vsub.f32 0.0, %v1222
        %v1396 = vsub.f32 0.0, %v1225
        %v1397 = vsub.f32 0.0, %v1228
        %v1398 = vsub.f32 0.0, %v1231
        %v1399 = vsub.f32 0.0, %v1234
        %v1400 = vsub.f32 0.0, %v1237
        %v1401 = vsub.f32 0.0, %v1240
        %v1402 = vsub.f32 0.0, %v1243
        %v1403 = vsub.f32 0.0, %v1246
        %v1404 = vsub.f32 0.0, %v1249
        %v1405 = vsub.f32 0.0, %v1252
        %v1406 = vsub.f32 0.0, %v1255
        %v1407 = vsub.f32 0.0, %v1258
        %v1408 = vsub.f32 0.0, %v1261
        %v1409 = vsub.f32 0.0, %v1264
        %v1410 = vmul.f32 %v1394, %v1363
        %v1411 = vmul.f32 %v1395, %v1365
        %v1412 = vmul.f32 %v1396, %v1367
        %v1413 = vmul.f32 %v1397, %v1369
        %v1414 = vmul.f32 %v1398, %v1371
        %v1415 = vmul.f32 %v1399, %v1373
        %v1416 = vmul.f32 %v1400, %v1375
        %v1417 = vmul.f32 %v1401, %v1377
        %v1418 = vmul.f32 %v1402, %v1379
        %v1419 = vmul.f32 %v1403, %v1381
        %v1420 = vmul.f32 %v1404, %v1383
        %v1421 = vmul.f32 %v1405, %v1385
        %v1422 = vmul.f32 %v1406, %v1387
        %v1423 = vmul.f32 %v1407, %v1389
        %v1424 = vmul.f32 %v1408, %v1391
        %v1425 = vmul.f32 %v1409, %v1393
        %v1426 = vmax.f32 %v1410, -10000.0
        %v1427 = vmax.f32 %v1411, -10000.0
        %v1428 = vmax.f32 %v1412, -10000.0
        %v1429 = vmax.f32 %v1413, -10000.0
        %v1430 = vmax.f32 %v1414, -10000.0
        %v1431 = vmax.f32 %v1415, -10000.0
        %v1432 = vmax.f32 %v1416, -10000.0
        %v1433 = vmax.f32 %v1417, -10000.0
        %v1434 = vmax.f32 %v1418, -10000.0
        %v1435 = vmax.f32 %v1419, -10000.0
        %v1436 = vmax.f32 %v1420, -10000.0
        %v1437 = vmax.f32 %v1421, -10000.0
        %v1438 = vmax.f32 %v1422, -10000.0
        %v1439 = vmax.f32 %v1423, -10000.0
        %v1440 = vmax.f32 %v1424, -10000.0
        %v1441 = vmax.f32 %v1425, -10000.0
        %v1442 = vmin.f32 %v1426, 10000.0
        %v1443 = vmin.f32 %v1427, 10000.0
        %v1444 = vmin.f32 %v1428, 10000.0
        %v1445 = vmin.f32 %v1429, 10000.0
        %v1446 = vmin.f32 %v1430, 10000.0
        %v1447 = vmin.f32 %v1431, 10000.0
        %v1448 = vmin.f32 %v1432, 10000.0
        %v1449 = vmin.f32 %v1433, 10000.0
        %v1450 = vmin.f32 %v1434, 10000.0
        %v1451 = vmin.f32 %v1435, 10000.0
        %v1452 = vmin.f32 %v1436, 10000.0
        %v1453 = vmin.f32 %v1437, 10000.0
        %v1454 = vmin.f32 %v1438, 10000.0
        %v1455 = vmin.f32 %v1439, 10000.0
        %v1456 = vmin.f32 %v1440, 10000.0
        %v1457 = vmin.f32 %v1441, 10000.0
        %v1458 = vround.ne.pseudo %v1442
        %v1459 = vround.ne.pseudo %v1443
        %v1460 = vround.ne.pseudo %v1444
        %v1461 = vround.ne.pseudo %v1445
        %v1462 = vround.ne.pseudo %v1446
        %v1463 = vround.ne.pseudo %v1447
        %v1464 = vround.ne.pseudo %v1448
        %v1465 = vround.ne.pseudo %v1449
        %v1466 = vround.ne.pseudo %v1450
        %v1467 = vround.ne.pseudo %v1451
        %v1468 = vround.ne.pseudo %v1452
        %v1469 = vround.ne.pseudo %v1453
        %v1470 = vround.ne.pseudo %v1454
        %v1471 = vround.ne.pseudo %v1455
        %v1472 = vround.ne.pseudo %v1456
        %v1473 = vround.ne.pseudo %v1457
        %v1474 = vmul.f32 %v1185, %v1363
        %v1475 = vmul.f32 %v1186, %v1363
        %v1476 = vmul.f32 %v1187, %v1365
        %v1477 = vmul.f32 %v1188, %v1365
        %v1478 = vmul.f32 %v1189, %v1367
        %v1479 = vmul.f32 %v1190, %v1367
        %v1480 = vmul.f32 %v1191, %v1369
        %v1481 = vmul.f32 %v1192, %v1369
        %v1482 = vmul.f32 %v1193, %v1371
        %v1483 = vmul.f32 %v1194, %v1371
        %v1484 = vmul.f32 %v1195, %v1373
        %v1485 = vmul.f32 %v1196, %v1373
        %v1486 = vmul.f32 %v1197, %v1375
        %v1487 = vmul.f32 %v1198, %v1375
        %v1488 = vmul.f32 %v1199, %v1377
        %v1489 = vmul.f32 %v1200, %v1377
        %v1490 = vmul.f32 %v1201, %v1379
        %v1491 = vmul.f32 %v1202, %v1379
        %v1492 = vmul.f32 %v1203, %v1381
        %v1493 = vmul.f32 %v1204, %v1381
        %v1494 = vmul.f32 %v1205, %v1383
        %v1495 = vmul.f32 %v1206, %v1383
        %v1496 = vmul.f32 %v1207, %v1385
        %v1497 = vmul.f32 %v1208, %v1385
        %v1498 = vmul.f32 %v1209, %v1387
        %v1499 = vmul.f32 %v1210, %v1387
        %v1500 = vmul.f32 %v1211, %v1389
        %v1501 = vmul.f32 %v1212, %v1389
        %v1502 = vmul.f32 %v1213, %v1391
        %v1503 = vmul.f32 %v1214, %v1391
        %v1504 = vmul.f32 %v1215, %v1393
        %v1505 = vmul.f32 %v1216, %v1393
        %v1506 = vround.ne.pseudo %v1474
        %v1507 = vround.ne.pseudo %v1475
        %v1508 = vround.ne.pseudo %v1476
        %v1509 = vround.ne.pseudo %v1477
        %v1510 = vround.ne.pseudo %v1478
        %v1511 = vround.ne.pseudo %v1479
        %v1512 = vround.ne.pseudo %v1480
        %v1513 = vround.ne.pseudo %v1481
        %v1514 = vround.ne.pseudo %v1482
        %v1515 = vround.ne.pseudo %v1483
        %v1516 = vround.ne.pseudo %v1484
        %v1517 = vround.ne.pseudo %v1485
        %v1518 = vround.ne.pseudo %v1486
        %v1519 = vround.ne.pseudo %v1487
        %v1520 = vround.ne.pseudo %v1488
        %v1521 = vround.ne.pseudo %v1489
        %v1522 = vround.ne.pseudo %v1490
        %v1523 = vround.ne.pseudo %v1491
        %v1524 = vround.ne.pseudo %v1492
        %v1525 = vround.ne.pseudo %v1493
        %v1526 = vround.ne.pseudo %v1494
        %v1527 = vround.ne.pseudo %v1495
        %v1528 = vround.ne.pseudo %v1496
        %v1529 = vround.ne.pseudo %v1497
        %v1530 = vround.ne.pseudo %v1498
        %v1531 = vround.ne.pseudo %v1499
        %v1532 = vround.ne.pseudo %v1500
        %v1533 = vround.ne.pseudo %v1501
        %v1534 = vround.ne.pseudo %v1502
        %v1535 = vround.ne.pseudo %v1503
        %v1536 = vround.ne.pseudo %v1504
        %v1537 = vround.ne.pseudo %v1505
        %v1538 = vadd.f32 %v1506, %v1458
        %v1539 = vadd.f32 %v1507, %v1458
        %v1540 = vadd.f32 %v1508, %v1459
        %v1541 = vadd.f32 %v1509, %v1459
        %v1542 = vadd.f32 %v1510, %v1460
        %v1543 = vadd.f32 %v1511, %v1460
        %v1544 = vadd.f32 %v1512, %v1461
        %v1545 = vadd.f32 %v1513, %v1461
        %v1546 = vadd.f32 %v1514, %v1462
        %v1547 = vadd.f32 %v1515, %v1462
        %v1548 = vadd.f32 %v1516, %v1463
        %v1549 = vadd.f32 %v1517, %v1463
        %v1550 = vadd.f32 %v1518, %v1464
        %v1551 = vadd.f32 %v1519, %v1464
        %v1552 = vadd.f32 %v1520, %v1465
        %v1553 = vadd.f32 %v1521, %v1465
        %v1554 = vadd.f32 %v1522, %v1466
        %v1555 = vadd.f32 %v1523, %v1466
        %v1556 = vadd.f32 %v1524, %v1467
        %v1557 = vadd.f32 %v1525, %v1467
        %v1558 = vadd.f32 %v1526, %v1468
        %v1559 = vadd.f32 %v1527, %v1468
        %v1560 = vadd.f32 %v1528, %v1469
        %v1561 = vadd.f32 %v1529, %v1469
        %v1562 = vadd.f32 %v1530, %v1470
        %v1563 = vadd.f32 %v1531, %v1470
        %v1564 = vadd.f32 %v1532, %v1471
        %v1565 = vadd.f32 %v1533, %v1471
        %v1566 = vadd.f32 %v1534, %v1472
        %v1567 = vadd.f32 %v1535, %v1472
        %v1568 = vadd.f32 %v1536, %v1473
        %v1569 = vadd.f32 %v1537, %v1473
        %v1570 = vmax.f32 %v1538, 0.0
        %v1571 = vmax.f32 %v1539, 0.0
        %v1572 = vmax.f32 %v1540, 0.0
        %v1573 = vmax.f32 %v1541, 0.0
        %v1574 = vmax.f32 %v1542, 0.0
        %v1575 = vmax.f32 %v1543, 0.0
        %v1576 = vmax.f32 %v1544, 0.0
        %v1577 = vmax.f32 %v1545, 0.0
        %v1578 = vmax.f32 %v1546, 0.0
        %v1579 = vmax.f32 %v1547, 0.0
        %v1580 = vmax.f32 %v1548, 0.0
        %v1581 = vmax.f32 %v1549, 0.0
        %v1582 = vmax.f32 %v1550, 0.0
        %v1583 = vmax.f32 %v1551, 0.0
        %v1584 = vmax.f32 %v1552, 0.0
        %v1585 = vmax.f32 %v1553, 0.0
        %v1586 = vmax.f32 %v1554, 0.0
        %v1587 = vmax.f32 %v1555, 0.0
        %v1588 = vmax.f32 %v1556, 0.0
        %v1589 = vmax.f32 %v1557, 0.0
        %v1590 = vmax.f32 %v1558, 0.0
        %v1591 = vmax.f32 %v1559, 0.0
        %v1592 = vmax.f32 %v1560, 0.0
        %v1593 = vmax.f32 %v1561, 0.0
        %v1594 = vmax.f32 %v1562, 0.0
        %v1595 = vmax.f32 %v1563, 0.0
        %v1596 = vmax.f32 %v1564, 0.0
        %v1597 = vmax.f32 %v1565, 0.0
        %v1598 = vmax.f32 %v1566, 0.0
        %v1599 = vmax.f32 %v1567, 0.0
        %v1600 = vmax.f32 %v1568, 0.0
        %v1601 = vmax.f32 %v1569, 0.0
        %v1602 = vmin.f32 %v1570, 15.0
        %v1603 = vmin.f32 %v1571, 15.0
        %v1604 = vmin.f32 %v1572, 15.0
        %v1605 = vmin.f32 %v1573, 15.0
        %v1606 = vmin.f32 %v1574, 15.0
        %v1607 = vmin.f32 %v1575, 15.0
        %v1608 = vmin.f32 %v1576, 15.0
        %v1609 = vmin.f32 %v1577, 15.0
        %v1610 = vmin.f32 %v1578, 15.0
        %v1611 = vmin.f32 %v1579, 15.0
        %v1612 = vmin.f32 %v1580, 15.0
        %v1613 = vmin.f32 %v1581, 15.0
        %v1614 = vmin.f32 %v1582, 15.0
        %v1615 = vmin.f32 %v1583, 15.0
        %v1616 = vmin.f32 %v1584, 15.0
        %v1617 = vmin.f32 %v1585, 15.0
        %v1618 = vmin.f32 %v1586, 15.0
        %v1619 = vmin.f32 %v1587, 15.0
        %v1620 = vmin.f32 %v1588, 15.0
        %v1621 = vmin.f32 %v1589, 15.0
        %v1622 = vmin.f32 %v1590, 15.0
        %v1623 = vmin.f32 %v1591, 15.0
        %v1624 = vmin.f32 %v1592, 15.0
        %v1625 = vmin.f32 %v1593, 15.0
        %v1626 = vmin.f32 %v1594, 15.0
        %v1627 = vmin.f32 %v1595, 15.0
        %v1628 = vmin.f32 %v1596, 15.0
        %v1629 = vmin.f32 %v1597, 15.0
        %v1630 = vmin.f32 %v1598, 15.0
        %v1631 = vmin.f32 %v1599, 15.0
        %v1632 = vmin.f32 %v1600, 15.0
        %v1633 = vmin.f32 %v1601, 15.0
        %v1634 = vsub.f32 %v1602, %v1458
        %v1635 = vsub.f32 %v1603, %v1458
        %v1636 = vsub.f32 %v1604, %v1459
        %v1637 = vsub.f32 %v1605, %v1459
        %v1638 = vsub.f32 %v1606, %v1460
        %v1639 = vsub.f32 %v1607, %v1460
        %v1640 = vsub.f32 %v1608, %v1461
        %v1641 = vsub.f32 %v1609, %v1461
        %v1642 = vsub.f32 %v1610, %v1462
        %v1643 = vsub.f32 %v1611, %v1462
        %v1644 = vsub.f32 %v1612, %v1463
        %v1645 = vsub.f32 %v1613, %v1463
        %v1646 = vsub.f32 %v1614, %v1464
        %v1647 = vsub.f32 %v1615, %v1464
        %v1648 = vsub.f32 %v1616, %v1465
        %v1649 = vsub.f32 %v1617, %v1465
        %v1650 = vsub.f32 %v1618, %v1466
        %v1651 = vsub.f32 %v1619, %v1466
        %v1652 = vsub.f32 %v1620, %v1467
        %v1653 = vsub.f32 %v1621, %v1467
        %v1654 = vsub.f32 %v1622, %v1468
        %v1655 = vsub.f32 %v1623, %v1468
        %v1656 = vsub.f32 %v1624, %v1469
        %v1657 = vsub.f32 %v1625, %v1469
        %v1658 = vsub.f32 %v1626, %v1470
        %v1659 = vsub.f32 %v1627, %v1470
        %v1660 = vsub.f32 %v1628, %v1471
        %v1661 = vsub.f32 %v1629, %v1471
        %v1662 = vsub.f32 %v1630, %v1472
        %v1663 = vsub.f32 %v1631, %v1472
        %v1664 = vsub.f32 %v1632, %v1473
        %v1665 = vsub.f32 %v1633, %v1473
        %v1666 = vmul.f32 %v1634, %v1346
        %v1667 = vmul.f32 %v1635, %v1346
        %v1668 = vmul.f32 %v1636, %v1347
        %v1669 = vmul.f32 %v1637, %v1347
        %v1670 = vmul.f32 %v1638, %v1348
        %v1671 = vmul.f32 %v1639, %v1348
        %v1672 = vmul.f32 %v1640, %v1349
        %v1673 = vmul.f32 %v1641, %v1349
        %v1674 = vmul.f32 %v1642, %v1350
        %v1675 = vmul.f32 %v1643, %v1350
        %v1676 = vmul.f32 %v1644, %v1351
        %v1677 = vmul.f32 %v1645, %v1351
        %v1678 = vmul.f32 %v1646, %v1352
        %v1679 = vmul.f32 %v1647, %v1352
        %v1680 = vmul.f32 %v1648, %v1353
        %v1681 = vmul.f32 %v1649, %v1353
        %v1682 = vmul.f32 %v1650, %v1354
        %v1683 = vmul.f32 %v1651, %v1354
        %v1684 = vmul.f32 %v1652, %v1355
        %v1685 = vmul.f32 %v1653, %v1355
        %v1686 = vmul.f32 %v1654, %v1356
        %v1687 = vmul.f32 %v1655, %v1356
        %v1688 = vmul.f32 %v1656, %v1357
        %v1689 = vmul.f32 %v1657, %v1357
        %v1690 = vmul.f32 %v1658, %v1358
        %v1691 = vmul.f32 %v1659, %v1358
        %v1692 = vmul.f32 %v1660, %v1359
        %v1693 = vmul.f32 %v1661, %v1359
        %v1694 = vmul.f32 %v1662, %v1360
        %v1695 = vmul.f32 %v1663, %v1360
        %v1696 = vmul.f32 %v1664, %v1361
        %v1697 = vmul.f32 %v1665, %v1361
        %v1698 = vpack.c.bf16 %v1668, %v1666
        %v1699 = vpack.c.bf16 %v1669, %v1667
        %v1700 = vpack.c.bf16 %v1672, %v1670
        %v1701 = vpack.c.bf16 %v1673, %v1671
        %v1702 = vpack.c.bf16 %v1676, %v1674
        %v1703 = vpack.c.bf16 %v1677, %v1675
        %v1704 = vpack.c.bf16 %v1680, %v1678
        %v1705 = vpack.c.bf16 %v1681, %v1679
        %v1706 = vpack.c.bf16 %v1684, %v1682
        %v1707 = vpack.c.bf16 %v1685, %v1683
        %v1708 = vpack.c.bf16 %v1688, %v1686
        %v1709 = vpack.c.bf16 %v1689, %v1687
        %v1710 = vpack.c.bf16 %v1692, %v1690
        %v1711 = vpack.c.bf16 %v1693, %v1691
        %v1712 = vpack.c.bf16 %v1696, %v1694
        %v1713 = vpack.c.bf16 %v1697, %v1695
        %v1714 = vld [vmem:[#allocation2] sm:$0xf]
        %v1715 = vld [vmem:[#allocation2 + $0x4] sm:$0xf]
        %v1716 = vld [vmem:[#allocation2 + $0x8] sm:$0xf]
        %v1717 = vld [vmem:[#allocation2 + $0xc] sm:$0xf]
        %v1718 = vld [vmem:[#allocation2 + $0x10] sm:$0xf]
        %v1719 = vld [vmem:[#allocation2 + $0x14] sm:$0xf]
        %v1720 = vld [vmem:[#allocation2 + $0x18] sm:$0xf]
        %v1721 = vld [vmem:[#allocation2 + $0x1c] sm:$0xf]
        %v1722 = vld [vmem:[#allocation2 + $0x20] sm:$0xf]
        %v1723 = vld [vmem:[#allocation2 + $0x24] sm:$0xf]
        %v1724 = vld [vmem:[#allocation2 + $0x28] sm:$0xf]
        %v1725 = vld [vmem:[#allocation2 + $0x2c] sm:$0xf]
        %v1726 = vld [vmem:[#allocation2 + $0x30] sm:$0xf]
        %v1727 = vld [vmem:[#allocation2 + $0x34] sm:$0xf]
        %v1728 = vld [vmem:[#allocation2 + $0x38] sm:$0xf]
        %v1729 = vld [vmem:[#allocation2 + $0x3c] sm:$0xf]
        %v1730 = vld [vmem:[#allocation2 + $0x40] sm:$0xf]
        %v1731 = vld [vmem:[#allocation2 + $0x44] sm:$0xf]
        %v1732 = vld [vmem:[#allocation2 + $0x48] sm:$0xf]
        %v1733 = vld [vmem:[#allocation2 + $0x4c] sm:$0xf]
        %v1734 = vld [vmem:[#allocation2 + $0x50] sm:$0xf]
        %v1735 = vld [vmem:[#allocation2 + $0x54] sm:$0xf]
        %v1736 = vld [vmem:[#allocation2 + $0x58] sm:$0xf]
        %v1737 = vld [vmem:[#allocation2 + $0x5c] sm:$0xf]
        %v1738 = vld [vmem:[#allocation2 + $0x60] sm:$0xf]
        %v1739 = vld [vmem:[#allocation2 + $0x64] sm:$0xf]
        %v1740 = vld [vmem:[#allocation2 + $0x68] sm:$0xf]
        %v1741 = vld [vmem:[#allocation2 + $0x6c] sm:$0xf]
        %v1742 = vld [vmem:[#allocation2 + $0x70] sm:$0xf]
        %v1743 = vld [vmem:[#allocation2 + $0x74] sm:$0xf]
        %v1744 = vld [vmem:[#allocation2 + $0x78] sm:$0xf]
        %v1745 = vld [vmem:[#allocation2 + $0x7c] sm:$0xf]
        %v1778 = vunpack.c.l.b16 %v1714
        %v1779 = vunpack.c.l.b16 %v1715
        %v1780 = vunpack.c.l.b16 %v1716
        %v1781 = vunpack.c.l.b16 %v1717
        %v1782 = vunpack.c.l.b16 %v1718
        %v1783 = vunpack.c.l.b16 %v1719
        %v1784 = vunpack.c.l.b16 %v1720
        %v1785 = vunpack.c.l.b16 %v1721
        %v1786 = vunpack.c.l.b16 %v1722
        %v1787 = vunpack.c.l.b16 %v1723
        %v1788 = vunpack.c.l.b16 %v1724
        %v1789 = vunpack.c.l.b16 %v1725
        %v1790 = vunpack.c.l.b16 %v1726
        %v1791 = vunpack.c.l.b16 %v1727
        %v1792 = vunpack.c.l.b16 %v1728
        %v1793 = vunpack.c.l.b16 %v1729
        %v1794 = vunpack.c.l.b16 %v1730
        %v1795 = vunpack.c.l.b16 %v1731
        %v1796 = vunpack.c.l.b16 %v1732
        %v1797 = vunpack.c.l.b16 %v1733
        %v1798 = vunpack.c.l.b16 %v1734
        %v1799 = vunpack.c.l.b16 %v1735
        %v1800 = vunpack.c.l.b16 %v1736
        %v1801 = vunpack.c.l.b16 %v1737
        %v1802 = vunpack.c.l.b16 %v1738
        %v1803 = vunpack.c.l.b16 %v1739
        %v1804 = vunpack.c.l.b16 %v1740
        %v1805 = vunpack.c.l.b16 %v1741
        %v1806 = vunpack.c.l.b16 %v1742
        %v1807 = vunpack.c.l.b16 %v1743
        %v1808 = vunpack.c.l.b16 %v1744
        %v1809 = vunpack.c.l.b16 %v1745
        %v1810 = vpack.c.b16 %v1779, %v1778
        %v1811 = vpack.c.b16 %v1781, %v1780
        %v1812 = vpack.c.b16 %v1783, %v1782
        %v1813 = vpack.c.b16 %v1785, %v1784
        %v1814 = vpack.c.b16 %v1787, %v1786
        %v1815 = vpack.c.b16 %v1789, %v1788
        %v1816 = vpack.c.b16 %v1791, %v1790
        %v1817 = vpack.c.b16 %v1793, %v1792
        %v1818 = vpack.c.b16 %v1795, %v1794
        %v1819 = vpack.c.b16 %v1797, %v1796
        %v1820 = vpack.c.b16 %v1799, %v1798
        %v1821 = vpack.c.b16 %v1801, %v1800
        %v1822 = vpack.c.b16 %v1803, %v1802
        %v1823 = vpack.c.b16 %v1805, %v1804
        %v1824 = vpack.c.b16 %v1807, %v1806
        %v1825 = vpack.c.b16 %v1809, %v1808
        %1842 = vmatprep.subr.bf16.mxu0 0
        %1843 = vmatpush1.bf16.msra.mxu0 %v1817
        %1844 = vmatprep.subr.bf16.mxu0 0
        %1845 = vmatpush1.bf16.msra.mxu0 %v1816
        %1846 = vmatprep.subr.bf16.mxu0 0
        %1847 = vmatpush1.bf16.msra.mxu0 %v1815
        %1848 = vmatprep.subr.bf16.mxu0 0
        %1849 = vmatpush1.bf16.msra.mxu0 %v1814
        %1850 = vmatprep.subr.bf16.mxu0 0
        %1851 = vmatpush1.bf16.msra.mxu0 %v1813
        %1852 = vmatprep.subr.bf16.mxu0 0
        %1853 = vmatpush1.bf16.msra.mxu0 %v1812
        %1854 = vmatprep.subr.bf16.mxu0 0
        %1855 = vmatpush1.bf16.msra.mxu0 %v1811
        %1856 = vmatprep.subr.bf16.mxu0 0
        %1857 = vmatpush1.bf16.msra.mxu0 %v1810
        %1858 = vmatprep.subr.bf16.mxu0 0
        %1859 = vmatpush2.bf16.msra.mxu0 %v1825
        %1860 = vmatprep.subr.bf16.mxu0 0
        %1861 = vmatpush2.bf16.msra.mxu0 %v1824
        %1862 = vmatprep.subr.bf16.mxu0 0
        %1863 = vmatpush2.bf16.msra.mxu0 %v1823
        %1864 = vmatprep.subr.bf16.mxu0 0
        %1865 = vmatpush2.bf16.msra.mxu0 %v1822
        %1866 = vmatprep.subr.bf16.mxu0 0
        %1867 = vmatpush2.bf16.msra.mxu0 %v1821
        %1868 = vmatprep.subr.bf16.mxu0 0
        %1869 = vmatpush2.bf16.msra.mxu0 %v1820
        %1870 = vmatprep.subr.bf16.mxu0 0
        %1871 = vmatpush2.bf16.msra.mxu0 %v1819
        %1872 = vmatprep.subr.bf16.mxu0 0
        %1873 = vmatpush2.bf16.msra.mxu0 %v1818
        %1874 = vmatprep.mubr.bf16.mxu0 %v1699
        %1875 = vmatmul.mubr.bf16.gmra.mxu0 %v1698
        %v1876 = vpop.f32.mrf.mxu0
        %v1877 = vadd.f32 0.0, %v1876
        %v1878 = vpop.f32.mrf.mxu0
        %v1879 = vpop.f32.mrf.mxu0
        %v1880 = vadd.f32 0.0, %v1879
        %v1881 = vpop.f32.mrf.mxu0
        %1882 = vmatprep.mubr.bf16.mxu0 %v1701
        %1883 = vmatmul.mubr.bf16.gmra.mxu0 %v1700
        %v1884 = vpop.f32.mrf.mxu0
        %v1885 = vadd.f32 0.0, %v1884
        %v1886 = vpop.f32.mrf.mxu0
        %v1887 = vpop.f32.mrf.mxu0
        %v1888 = vadd.f32 0.0, %v1887
        %v1889 = vpop.f32.mrf.mxu0
        %1890 = vmatprep.mubr.bf16.mxu0 %v1703
        %1891 = vmatmul.mubr.bf16.gmra.mxu0 %v1702
        %v1892 = vpop.f32.mrf.mxu0
        %v1893 = vadd.f32 0.0, %v1892
        %v1894 = vpop.f32.mrf.mxu0
        %v1895 = vpop.f32.mrf.mxu0
        %v1896 = vadd.f32 0.0, %v1895
        %v1897 = vpop.f32.mrf.mxu0
        %1898 = vmatprep.mubr.bf16.mxu0 %v1705
        %1899 = vmatmul.mubr.bf16.gmra.mxu0 %v1704
        %v1900 = vpop.f32.mrf.mxu0
        %v1901 = vadd.f32 0.0, %v1900
        %v1902 = vpop.f32.mrf.mxu0
        %v1903 = vpop.f32.mrf.mxu0
        %v1904 = vadd.f32 0.0, %v1903
        %v1905 = vpop.f32.mrf.mxu0
        %1906 = vmatprep.mubr.bf16.mxu0 %v1707
        %1907 = vmatmul.mubr.bf16.gmra.mxu0 %v1706
        %v1908 = vpop.f32.mrf.mxu0
        %v1909 = vadd.f32 0.0, %v1908
        %v1910 = vpop.f32.mrf.mxu0
        %v1911 = vpop.f32.mrf.mxu0
        %v1912 = vadd.f32 0.0, %v1911
        %v1913 = vpop.f32.mrf.mxu0
        %1914 = vmatprep.mubr.bf16.mxu0 %v1709
        %1915 = vmatmul.mubr.bf16.gmra.mxu0 %v1708
        %v1916 = vpop.f32.mrf.mxu0
        %v1917 = vadd.f32 0.0, %v1916
        %v1918 = vpop.f32.mrf.mxu0
        %v1919 = vpop.f32.mrf.mxu0
        %v1920 = vadd.f32 0.0, %v1919
        %v1921 = vpop.f32.mrf.mxu0
        %1922 = vmatprep.mubr.bf16.mxu0 %v1711
        %1923 = vmatmul.mubr.bf16.gmra.mxu0 %v1710
        %v1924 = vpop.f32.mrf.mxu0
        %v1925 = vadd.f32 0.0, %v1924
        %v1926 = vpop.f32.mrf.mxu0
        %v1927 = vpop.f32.mrf.mxu0
        %v1928 = vadd.f32 0.0, %v1927
        %v1929 = vpop.f32.mrf.mxu0
        %1930 = vmatprep.mubr.bf16.mxu0 %v1713
        %1931 = vmatmul.mubr.bf16.gmra.mxu0 %v1712
        %v1932 = vpop.f32.mrf.mxu0
        %v1933 = vadd.f32 0.0, %v1932
        %v1934 = vpop.f32.mrf.mxu0
        %v1935 = vpop.f32.mrf.mxu0
        %v1936 = vadd.f32 0.0, %v1935
        %v1937 = vpop.f32.mrf.mxu0
        %1938 = vdwg.mxu0
        %1939 = vst [vmem:[%s257] sm:$0xff] %v1877
        %1940 = vst [vmem:[%s257 + $0x8] sm:$0xff] %v1880
        %1941 = vst [vmem:[%s257 + $0x10] sm:$0xff] %v1885
        %1942 = vst [vmem:[%s257 + $0x18] sm:$0xff] %v1888
        %1943 = vst [vmem:[%s257 + $0x20] sm:$0xff] %v1893
        %1944 = vst [vmem:[%s257 + $0x28] sm:$0xff] %v1896
        %1945 = vst [vmem:[%s257 + $0x30] sm:$0xff] %v1901
        %1946 = vst [vmem:[%s257 + $0x38] sm:$0xff] %v1904
        %1947 = vst [vmem:[%s257 + $0x40] sm:$0xff] %v1909
        %1948 = vst [vmem:[%s257 + $0x48] sm:$0xff] %v1912
        %1949 = vst [vmem:[%s257 + $0x50] sm:$0xff] %v1917
        %1950 = vst [vmem:[%s257 + $0x58] sm:$0xff] %v1920
        %1951 = vst [vmem:[%s257 + $0x60] sm:$0xff] %v1925
        %1952 = vst [vmem:[%s257 + $0x68] sm:$0xff] %v1928
        %1953 = vst [vmem:[%s257 + $0x70] sm:$0xff] %v1933
        %1954 = vst [vmem:[%s257 + $0x78] sm:$0xff] %v1936
        %s1955 = sand.u32 %s118, 1
        %s1956 = scalar_lea.sflag [#allocation5], %s1955
        %s1957 = sand.u32 %s118, 1
        %s1958 = smul.addr %s1957, 128
        %s1959 = scalar_lea.vmem [#allocation9], %s1958
        // Predicated region
        $region49: #{tpu_custom_call.1} parent=31 // pred_check
          %p1960 = pneg %p128
        $region50: #{tpu_custom_call.1} parent=31 // pred_check_branch
          %1962 = sbr.rel (%p1960) target = $region52
        $region51: #{tpu_custom_call.1} parent=31 // pred_region
          %s1963 = smul.u32 16, %s26
          %s1965 = ssub.s32 2048, 2048
          %1966 = vsyncadd %s1956, %s1965
          %s1967 = smul.addr %s25, 16
          %s1968 = sadd.s32 %s1963, %s1967
          %s1969 = smul.addr %s1968, 128
          %s1970 = scalar_lea.hbm %s3, %s1969
          %s1971 = sshll.u32 %s1959, 4
          %s1972 = int_to_ptr.vmem [resolvable:$true] %s1971
          %1977 = dma.vmem_to_hbm [thread:$0]  %s1972, 2048, %s1970, %s1956, 128, 128, 8
        $region52: #{tpu_custom_call.1} parent=31 // pred_fallthru
          _
      $region32: #{tpu_custom_call.1} parent=5 // pred_fallthru
        _
      %p1978 = scmp.le.s32.totalorder 2, %s16
      // Predicated region
      $region53: #{tpu_custom_call.1} parent=5 // pred_check
        %p1979 = pneg %p1978
      $region54: #{tpu_custom_call.1} parent=5 // pred_check_branch
        %1981 = sbr.rel (%p1979) target = $region56
      $region55: #{tpu_custom_call.1} parent=5 // pred_region
        %s1982 = ssub.s32 %s16, 2
        // Predicated region
        $region57: #{tpu_custom_call.1} parent=55 // pred_check
          %p1983 = pneg %p134
        $region58: #{tpu_custom_call.1} parent=55 // pred_check_branch
          %1985 = sbr.rel (%p1983) target = $region60
        $region59: #{tpu_custom_call.1} parent=55 // pred_region
          %s1986 = sand.u32 %s119, 1
          %s1987 = scalar_lea.sflag [#allocation5], %s1986
          %s1988 = sand.u32 %s119, 1
          %s1989 = smul.addr %s1988, 128
          %s1990 = scalar_lea.vmem [#allocation9], %s1989
          %1991 = dma.done %s1987, 2048
        $region60: #{tpu_custom_call.1} parent=55 // pred_fallthru
          _
      $region56: #{tpu_custom_call.1} parent=5 // pred_fallthru
        _
    $region6: #{tpu_custom_call.1} parent=1 // loop_footer
      %s20 = sadd.s32 1, %s16
    $region7: #{tpu_custom_call.1} parent=1 // loop_footer_branch
      %15 = sbr.rel target = $region3
    $region8: #{tpu_custom_call.1} parent=1 // loop_exit
      _
    %1992 = vsyncpa [#allocation4], 1
    %s1993 = scalar_lea.sflag [#allocation4], 1
    %1994 = vsyncpa %s1993, 1
    %1995 = vsyncpa [#allocation7], 1
    %s1996 = scalar_lea.sflag [#allocation7], 1
    %1997 = vsyncpa %s1996, 1
    %1998 = vsyncpa [#allocation5], 1
    %s1999 = scalar_lea.sflag [#allocation5], 1
    %2000 = vsyncpa %s1999, 1

</llo_original>
